<compile_context>
chip_gen: v7x
topology: tpu7x:2x2x1
jax: 0.10.0
libtpu: 0.0.40
codegen_flags: <defaults>
</compile_context>

<pallas_src>
import jax
import jax.numpy as jnp
import numpy as np
from jax.experimental import pallas as pl
from jax.experimental.pallas import tpu as pltpu


def _round_up(x, m):
    return (x + m - 1) // m * m


def _lstm_max_linear_kernel(g_ref, len_ref, whh_ref, wo_ref, bo_ref, out_ref):
    TB = g_ref.shape[0]
    B = len_ref.shape[0]          # padded batch (sublane multiple)
    Hp = whh_ref.shape[0]         # padded hidden (lane multiple)
    T = TB // B

    len_col = len_ref[...]                             # (B, 1) int32
    h0 = jnp.zeros((B, Hp), jnp.float32)
    c0 = jnp.zeros((B, Hp), jnp.float32)
    # Finite "-inf": h in (-1, 1), so any value < -1 reproduces the
    # pad_packed_sequence(-inf) + max-pool semantics without NaN risk for
    # dummy (length-0) padded batch rows.
    m0 = jnp.full((B, Hp), -1e30, jnp.float32)

    def step(t, carry):
        h, c, m = carry
        row = pl.multiple_of(t * B, B)
        # Precomputed x-side gate pre-activations (f32) + recurrent matmul (bf16
        # operands, f32 accumulation).  W_hh is loop-invariant; Mosaic sees the
        # fully unrolled loop and can hoist/reuse the RHS push.
        gates = g_ref[pl.ds(row, B), :] + jnp.dot(
            h.astype(jnp.bfloat16), whh_ref[...],
            preferred_element_type=jnp.float32)        # (B, 4*Hp) f32
        # Gate order [i, f, o, g]: one contiguous sigmoid slab, trailing tanh block.
        sig = jax.nn.sigmoid(gates[:, 0:3 * Hp])
        i_g = sig[:, 0 * Hp:1 * Hp]
        f_g = sig[:, 1 * Hp:2 * Hp]
        o_g = sig[:, 2 * Hp:3 * Hp]
        g_g = jnp.tanh(gates[:, 3 * Hp:4 * Hp])
        c_new = f_g * c + i_g * g_g
        h_new = o_g * jnp.tanh(c_new)
        # Only timesteps t < length[b] contribute to the max (packed-sequence
        # + pad(-inf) + adaptive_max_pool1d semantics).
        valid = t < len_col                            # (B, 1) bool
        m_new = jnp.where(valid, jnp.maximum(m, h_new), m)
        return h_new, c_new, m_new

    _, _, m = jax.lax.fori_loop(0, T, step, (h0, c0, m0), unroll=True)

    # Neutralize dummy padded batch rows (length 0) so no 1e30-scale values hit W_o.
    m = jnp.where(len_col > 0, m, 0.0)

    out_ref[...] = (jnp.dot(m.astype(jnp.bfloat16), wo_ref[...],
                            preferred_element_type=jnp.float32)
                    + bo_ref[...])


@jax.jit
def char_rnn_classifier_pallas(tokens, lengths, embed_w, w_ih, w_hh, b_ih, b_hh,
                               w_o, b_o):
    """tokens: (T, B) int32; lengths: (B,) int.  Returns (B, output_size) f32."""
    T, B = tokens.shape
    H = w_hh.shape[1]
    O = w_o.shape[0]

    Bp = _round_up(max(B, 8), 8)      # fill sublanes
    Hp = _round_up(H, 128)            # gate slices lane-aligned, MXU-wide N=4*Hp
    Op = _round_up(O, 128)            # lane-dense output store

    GATE_PERM = (0, 1, 3, 2)          # PyTorch [i, f, g, o] -> kernel [i, f, o, g]

    def pad_gate_cols(w_t):           # (in, 4H) -> (in, 4*Hp), reorder + per-gate pad
        in_dim = w_t.shape[0]
        w4 = w_t.reshape(in_dim, 4, H)[:, GATE_PERM, :]
        return jnp.pad(w4, ((0, 0), (0, 0), (0, Hp - H))).reshape(in_dim, 4 * Hp)

    # Gate lookup table: folds the embedding and the input projection into one
    # precomputed (vocab, 4*Hp) f32 table; the kernel never sees E or W_ih.
    gate_tbl = (embed_w.astype(jnp.float32) @ w_ih.T.astype(jnp.float32)
                + (b_ih + b_hh).astype(jnp.float32))                    # (V, 4H)
    gate_tbl = pad_gate_cols(gate_tbl)                                  # (V, 4Hp)

    # Zero padding is exact: padded hidden units see zero weights/bias, so
    # i=f=o=0.5, g=0 -> c=0, h=0 forever, and their zero W_o rows contribute 0.
    w_hh_t = jnp.pad(pad_gate_cols(w_hh.T.astype(jnp.float32)),
                     ((0, Hp - H), (0, 0))).astype(jnp.bfloat16)        # (Hp, 4Hp)
    w_o_t = jnp.pad(w_o.T.astype(jnp.float32),
                    ((0, Hp - H), (0, Op - O))).astype(jnp.bfloat16)    # (Hp, Op)
    b_o2 = jnp.pad(b_o.astype(jnp.float32).reshape(1, O), ((0, 0), (0, Op - O)))

    # Pad batch to a sublane multiple, gather the per-token gate rows (JAX glue),
    # and flatten (time, batch) so the kernel slices (Bp, 4*Hp) rows per step.
    tok_p = jnp.pad(tokens.astype(jnp.int32), ((0, 0), (0, Bp - B)))    # pad -> id 0
    g2d = gate_tbl[tok_p].reshape(T * Bp, 4 * Hp)                       # (T*Bp, 4Hp)
    len2d = jnp.pad(lengths.astype(jnp.int32), (0, Bp - B)).reshape(Bp, 1)

    out = pl.pallas_call(
        _lstm_max_linear_kernel,
        out_shape=jax.ShapeDtypeStruct((Bp, Op), jnp.float32),
        grid_spec=pltpu.PrefetchScalarGridSpec(
            num_scalar_prefetch=0,
            grid=(1,),                                         # single invocation
            in_specs=[
                pl.BlockSpec((T * Bp, 4 * Hp), lambda i: (0, 0)),  # gate table rows
                pl.BlockSpec((Bp, 1), lambda i: (0, 0)),           # lengths
                pl.BlockSpec((Hp, 4 * Hp), lambda i: (0, 0)),      # W_hh^T (bf16)
                pl.BlockSpec((Hp, Op), lambda i: (0, 0)),          # W_o^T  (bf16)
                pl.BlockSpec((1, Op), lambda i: (0, 0)),           # b_o
            ],
            out_specs=pl.BlockSpec((Bp, Op), lambda i: (0, 0)),
        ),
        compiler_params=pltpu.CompilerParams(
            dimension_semantics=("arbitrary",)),
    )(g2d, len2d, w_hh_t, w_o_t, b_o2)

    return out[:B, :O]


def reference_forward(x_emb, lengths, w_ih, w_hh, b_ih, b_hh, w_o, b_o):
    """Pure-f32 JAX reference matching the PyTorch forward semantics."""
    T, B, E = x_emb.shape
    H = w_hh.shape[1]

    def step(carry, x_t):
        h, c = carry
        gates = x_t @ w_ih.T + h @ w_hh.T + b_ih + b_hh
        i, f, g, o = jnp.split(gates, 4, axis=1)
        i = jax.nn.sigmoid(i)
        f = jax.nn.sigmoid(f)
        g = jnp.tanh(g)
        o = jax.nn.sigmoid(o)
        c = f * c + i * g
        h = o * jnp.tanh(c)
        return (h, c), h

    init = (jnp.zeros((B, H), jnp.float32), jnp.zeros((B, H), jnp.float32))
    _, hs = jax.lax.scan(step, init, x_emb)             # (T, B, H)
    mask = jnp.arange(T)[:, None, None] < lengths[None, :, None]
    hs = jnp.where(mask, hs, -jnp.inf)
    pooled = jnp.max(hs, axis=0)                        # (B, H)
    return pooled @ w_o.T + b_o


if __name__ == "__main__":
    # Small, forward-consistent shapes.
    vocab_size = 16        # input_size
    embedding_size = 32
    hidden_size = 32
    output_size = 8
    T, B = 8, 2
    pad_idx = 0

    key = jax.random.PRNGKey(0)
    keys = jax.random.split(key, 10)

    bound = 1.0 / np.sqrt(hidden_size)
    embed_w = jax.random.normal(keys[0], (vocab_size, embedding_size), jnp.float32)
    embed_w = embed_w.at[pad_idx].set(0.0)              # padding_idx row is zero
    w_ih = jax.random.uniform(keys[1], (4 * hidden_size, embedding_size),
                              jnp.float32, -bound, bound)
    w_hh = jax.random.uniform(keys[2], (4 * hidden_size, hidden_size),
                              jnp.float32, -bound, bound)
    b_ih = jax.random.uniform(keys[3], (4 * hidden_size,), jnp.float32, -bound, bound)
    b_hh = jax.random.uniform(keys[4], (4 * hidden_size,), jnp.float32, -bound, bound)
    w_o = jax.random.uniform(keys[5], (output_size, hidden_size),
                             jnp.float32, -bound, bound)
    b_o = jax.random.uniform(keys[6], (output_size,), jnp.float32, -bound, bound)

    # Inputs: (T, B) token ids, lengths sorted descending (pack_padded_sequence).
    lengths = jnp.array([T, 5], dtype=jnp.int32)
    tokens = jax.random.randint(keys[7], (T, B), 1, vocab_size, jnp.int32)
    time_idx = jnp.arange(T)[:, None]
    tokens = jnp.where(time_idx < lengths[None, :], tokens, pad_idx)

    out = char_rnn_classifier_pallas(tokens, lengths, embed_w, w_ih, w_hh,
                                     b_ih, b_hh, w_o, b_o)
    out = jax.block_until_ready(out)

    # Reference uses the plain embedding lookup + f32 LSTM.
    x_emb = embed_w[tokens]                             # (T, B, E) float32
    ref = reference_forward(x_emb, lengths, w_ih, w_hh, b_ih, b_hh, w_o, b_o)
    np.testing.assert_allclose(np.asarray(out), np.asarray(ref),
                               atol=2e-2, rtol=2e-2)

    print("KERNEL_OK")
</pallas_src>

<mosaic_0001>
module attributes {stable_mosaic.version = 11 : i64} {
  func.func @_lstm_max_linear_kernel(%arg0: i32, %arg1: memref<64x512xf32, #tpu.memory_space<vmem>>, %arg2: memref<8x1xi32, #tpu.memory_space<vmem>>, %arg3: memref<128x512xbf16, #tpu.memory_space<vmem>>, %arg4: memref<128x128xbf16, #tpu.memory_space<vmem>>, %arg5: memref<1x128xf32, #tpu.memory_space<vmem>>, %arg6: memref<8x128xf32, #tpu.memory_space<vmem>>) attributes {dimension_semantics = [#tpu.dimension_semantics<arbitrary>], iteration_bounds = array<i64: 1>, scalar_prefetch = 0 : i64, scratch_operands = 0 : i64, tpu.core_type = #tpu.core_type<tc>, window_params = [{pipeline_mode = #tpu.pipeline_mode<synchronous>, transform_indices = @transform_0, window_bounds = array<i64: 64, 512>}, {pipeline_mode = #tpu.pipeline_mode<synchronous>, transform_indices = @transform_1, window_bounds = array<i64: 8, 1>}, {pipeline_mode = #tpu.pipeline_mode<synchronous>, transform_indices = @transform_2, window_bounds = array<i64: 128, 512>}, {pipeline_mode = #tpu.pipeline_mode<synchronous>, transform_indices = @transform_3, window_bounds = array<i64: 128, 128>}, {pipeline_mode = #tpu.pipeline_mode<synchronous>, transform_indices = @transform_4, window_bounds = array<i64: 1, 128>}, {pipeline_mode = #tpu.pipeline_mode<synchronous>, transform_indices = @transform_5, window_bounds = array<i64: 8, 128>}]} {
    %c0 = arith.constant 0 : index
    %c0_0 = arith.constant 0 : index
    %0 = vector.load %arg2[%c0, %c0_0] : memref<8x1xi32, #tpu.memory_space<vmem>>, vector<8x1xi32>
    %cst = arith.constant 0.000000e+00 : f32
    %1 = vector.broadcast %cst : f32 to vector<8x128xf32>
    %cst_1 = arith.constant 0.000000e+00 : f32
    %2 = vector.broadcast %cst_1 : f32 to vector<8x128xf32>
    %cst_2 = arith.constant -1.000000e+30 : f32
    %3 = vector.broadcast %cst_2 : f32 to vector<8x128xf32>
    %c0_i32 = arith.constant 0 : i32
    %c8_i32 = arith.constant 8 : i32
    %4 = arith.muli %c0_i32, %c8_i32 : i32
    %5 = tpu.assume_multiple %4, 8 : i32
    %6 = arith.index_cast %5 : i32 to index
    %c0_3 = arith.constant 0 : index
    %7 = vector.load %arg1[%6, %c0_3] : memref<64x512xf32, #tpu.memory_space<vmem>>, vector<8x512xf32>
    %8 = arith.truncf %1 : vector<8x128xf32> to vector<8x128xbf16>
    %c0_4 = arith.constant 0 : index
    %c0_5 = arith.constant 0 : index
    %9 = vector.load %arg3[%c0_4, %c0_5] : memref<128x512xbf16, #tpu.memory_space<vmem>>, vector<128x512xbf16>
    %cst_6 = arith.constant dense<0.000000e+00> : vector<8x512xf32>
    %10 = tpu.matmul %8, %9, %cst_6 {dimension_numbers = #tpu.dot_dimension_numbers<[1], [0], [0], [1], [0, 0, 1, 1], [], []>} : vector<8x128xbf16>, vector<128x512xbf16>, vector<8x512xf32> -> vector<8x512xf32>
    %11 = arith.addf %7, %10 : vector<8x512xf32>
    %12 = vector.extract_strided_slice %11 {offsets = [0, 0], sizes = [8, 384], strides = [1, 1]} : vector<8x512xf32> to vector<8x384xf32>
    %13 = arith.negf %12 : vector<8x384xf32>
    %14 = math.exp %13 : vector<8x384xf32>
    %cst_7 = arith.constant 1.000000e+00 : f32
    %15 = vector.broadcast %cst_7 : f32 to vector<8x384xf32>
    %16 = arith.addf %15, %14 : vector<8x384xf32>
    %17 = arith.divf %15, %16 : vector<8x384xf32>
    %18 = vector.extract_strided_slice %17 {offsets = [0, 0], sizes = [8, 128], strides = [1, 1]} : vector<8x384xf32> to vector<8x128xf32>
    %19 = vector.extract_strided_slice %17 {offsets = [0, 128], sizes = [8, 128], strides = [1, 1]} : vector<8x384xf32> to vector<8x128xf32>
    %20 = vector.extract_strided_slice %17 {offsets = [0, 256], sizes = [8, 128], strides = [1, 1]} : vector<8x384xf32> to vector<8x128xf32>
    %21 = vector.extract_strided_slice %11 {offsets = [0, 384], sizes = [8, 128], strides = [1, 1]} : vector<8x512xf32> to vector<8x128xf32>
    %22 = math.tanh %21 : vector<8x128xf32>
    %23 = arith.mulf %19, %2 : vector<8x128xf32>
    %24 = arith.mulf %18, %22 : vector<8x128xf32>
    %25 = arith.addf %23, %24 : vector<8x128xf32>
    %26 = math.tanh %25 : vector<8x128xf32>
    %27 = arith.mulf %20, %26 : vector<8x128xf32>
    %28 = vector.broadcast %c0_i32 : i32 to vector<8x1xi32>
    %29 = arith.cmpi slt, %28, %0 : vector<8x1xi32>
    %30 = arith.maximumf %3, %27 : vector<8x128xf32>
    %31 = vector.shape_cast %29 : vector<8x1xi1> to vector<8x1xi1>
    %32 = vector.broadcast %31 : vector<8x1xi1> to vector<8x128xi1>
    %33 = arith.select %32, %30, %3 : vector<8x128xi1>, vector<8x128xf32>
    %c1_i32 = arith.constant 1 : i32
    %c8_i32_8 = arith.constant 8 : i32
    %34 = arith.muli %c1_i32, %c8_i32_8 : i32
    %35 = tpu.assume_multiple %34, 8 : i32
    %36 = arith.index_cast %35 : i32 to index
    %c0_9 = arith.constant 0 : index
    %37 = vector.load %arg1[%36, %c0_9] : memref<64x512xf32, #tpu.memory_space<vmem>>, vector<8x512xf32>
    %38 = arith.truncf %27 : vector<8x128xf32> to vector<8x128xbf16>
    %c0_10 = arith.constant 0 : index
    %c0_11 = arith.constant 0 : index
    %39 = vector.load %arg3[%c0_10, %c0_11] : memref<128x512xbf16, #tpu.memory_space<vmem>>, vector<128x512xbf16>
    %cst_12 = arith.constant dense<0.000000e+00> : vector<8x512xf32>
    %40 = tpu.matmul %38, %39, %cst_12 {dimension_numbers = #tpu.dot_dimension_numbers<[1], [0], [0], [1], [0, 0, 1, 1], [], []>} : vector<8x128xbf16>, vector<128x512xbf16>, vector<8x512xf32> -> vector<8x512xf32>
    %41 = arith.addf %37, %40 : vector<8x512xf32>
    %42 = vector.extract_strided_slice %41 {offsets = [0, 0], sizes = [8, 384], strides = [1, 1]} : vector<8x512xf32> to vector<8x384xf32>
    %43 = arith.negf %42 : vector<8x384xf32>
    %44 = math.exp %43 : vector<8x384xf32>
    %cst_13 = arith.constant 1.000000e+00 : f32
    %45 = vector.broadcast %cst_13 : f32 to vector<8x384xf32>
    %46 = arith.addf %45, %44 : vector<8x384xf32>
    %47 = arith.divf %45, %46 : vector<8x384xf32>
    %48 = vector.extract_strided_slice %47 {offsets = [0, 0], sizes = [8, 128], strides = [1, 1]} : vector<8x384xf32> to vector<8x128xf32>
    %49 = vector.extract_strided_slice %47 {offsets = [0, 128], sizes = [8, 128], strides = [1, 1]} : vector<8x384xf32> to vector<8x128xf32>
    %50 = vector.extract_strided_slice %47 {offsets = [0, 256], sizes = [8, 128], strides = [1, 1]} : vector<8x384xf32> to vector<8x128xf32>
    %51 = vector.extract_strided_slice %41 {offsets = [0, 384], sizes = [8, 128], strides = [1, 1]} : vector<8x512xf32> to vector<8x128xf32>
    %52 = math.tanh %51 : vector<8x128xf32>
    %53 = arith.mulf %49, %25 : vector<8x128xf32>
    %54 = arith.mulf %48, %52 : vector<8x128xf32>
    %55 = arith.addf %53, %54 : vector<8x128xf32>
    %56 = math.tanh %55 : vector<8x128xf32>
    %57 = arith.mulf %50, %56 : vector<8x128xf32>
    %58 = vector.broadcast %c1_i32 : i32 to vector<8x1xi32>
    %59 = arith.cmpi slt, %58, %0 : vector<8x1xi32>
    %60 = arith.maximumf %33, %57 : vector<8x128xf32>
    %61 = vector.shape_cast %59 : vector<8x1xi1> to vector<8x1xi1>
    %62 = vector.broadcast %61 : vector<8x1xi1> to vector<8x128xi1>
    %63 = arith.select %62, %60, %33 : vector<8x128xi1>, vector<8x128xf32>
    %c2_i32 = arith.constant 2 : i32
    %c8_i32_14 = arith.constant 8 : i32
    %64 = arith.muli %c2_i32, %c8_i32_14 : i32
    %65 = tpu.assume_multiple %64, 8 : i32
    %66 = arith.index_cast %65 : i32 to index
    %c0_15 = arith.constant 0 : index
    %67 = vector.load %arg1[%66, %c0_15] : memref<64x512xf32, #tpu.memory_space<vmem>>, vector<8x512xf32>
    %68 = arith.truncf %57 : vector<8x128xf32> to vector<8x128xbf16>
    %c0_16 = arith.constant 0 : index
    %c0_17 = arith.constant 0 : index
    %69 = vector.load %arg3[%c0_16, %c0_17] : memref<128x512xbf16, #tpu.memory_space<vmem>>, vector<128x512xbf16>
    %cst_18 = arith.constant dense<0.000000e+00> : vector<8x512xf32>
    %70 = tpu.matmul %68, %69, %cst_18 {dimension_numbers = #tpu.dot_dimension_numbers<[1], [0], [0], [1], [0, 0, 1, 1], [], []>} : vector<8x128xbf16>, vector<128x512xbf16>, vector<8x512xf32> -> vector<8x512xf32>
    %71 = arith.addf %67, %70 : vector<8x512xf32>
    %72 = vector.extract_strided_slice %71 {offsets = [0, 0], sizes = [8, 384], strides = [1, 1]} : vector<8x512xf32> to vector<8x384xf32>
    %73 = arith.negf %72 : vector<8x384xf32>
    %74 = math.exp %73 : vector<8x384xf32>
    %cst_19 = arith.constant 1.000000e+00 : f32
    %75 = vector.broadcast %cst_19 : f32 to vector<8x384xf32>
    %76 = arith.addf %75, %74 : vector<8x384xf32>
    %77 = arith.divf %75, %76 : vector<8x384xf32>
    %78 = vector.extract_strided_slice %77 {offsets = [0, 0], sizes = [8, 128], strides = [1, 1]} : vector<8x384xf32> to vector<8x128xf32>
    %79 = vector.extract_strided_slice %77 {offsets = [0, 128], sizes = [8, 128], strides = [1, 1]} : vector<8x384xf32> to vector<8x128xf32>
    %80 = vector.extract_strided_slice %77 {offsets = [0, 256], sizes = [8, 128], strides = [1, 1]} : vector<8x384xf32> to vector<8x128xf32>
    %81 = vector.extract_strided_slice %71 {offsets = [0, 384], sizes = [8, 128], strides = [1, 1]} : vector<8x512xf32> to vector<8x128xf32>
    %82 = math.tanh %81 : vector<8x128xf32>
    %83 = arith.mulf %79, %55 : vector<8x128xf32>
    %84 = arith.mulf %78, %82 : vector<8x128xf32>
    %85 = arith.addf %83, %84 : vector<8x128xf32>
    %86 = math.tanh %85 : vector<8x128xf32>
    %87 = arith.mulf %80, %86 : vector<8x128xf32>
    %88 = vector.broadcast %c2_i32 : i32 to vector<8x1xi32>
    %89 = arith.cmpi slt, %88, %0 : vector<8x1xi32>
    %90 = arith.maximumf %63, %87 : vector<8x128xf32>
    %91 = vector.shape_cast %89 : vector<8x1xi1> to vector<8x1xi1>
    %92 = vector.broadcast %91 : vector<8x1xi1> to vector<8x128xi1>
    %93 = arith.select %92, %90, %63 : vector<8x128xi1>, vector<8x128xf32>
    %c3_i32 = arith.constant 3 : i32
    %c8_i32_20 = arith.constant 8 : i32
    %94 = arith.muli %c3_i32, %c8_i32_20 : i32
    %95 = tpu.assume_multiple %94, 8 : i32
    %96 = arith.index_cast %95 : i32 to index
    %c0_21 = arith.constant 0 : index
    %97 = vector.load %arg1[%96, %c0_21] : memref<64x512xf32, #tpu.memory_space<vmem>>, vector<8x512xf32>
    %98 = arith.truncf %87 : vector<8x128xf32> to vector<8x128xbf16>
    %c0_22 = arith.constant 0 : index
    %c0_23 = arith.constant 0 : index
    %99 = vector.load %arg3[%c0_22, %c0_23] : memref<128x512xbf16, #tpu.memory_space<vmem>>, vector<128x512xbf16>
    %cst_24 = arith.constant dense<0.000000e+00> : vector<8x512xf32>
    %100 = tpu.matmul %98, %99, %cst_24 {dimension_numbers = #tpu.dot_dimension_numbers<[1], [0], [0], [1], [0, 0, 1, 1], [], []>} : vector<8x128xbf16>, vector<128x512xbf16>, vector<8x512xf32> -> vector<8x512xf32>
    %101 = arith.addf %97, %100 : vector<8x512xf32>
    %102 = vector.extract_strided_slice %101 {offsets = [0, 0], sizes = [8, 384], strides = [1, 1]} : vector<8x512xf32> to vector<8x384xf32>
    %103 = arith.negf %102 : vector<8x384xf32>
    %104 = math.exp %103 : vector<8x384xf32>
    %cst_25 = arith.constant 1.000000e+00 : f32
    %105 = vector.broadcast %cst_25 : f32 to vector<8x384xf32>
    %106 = arith.addf %105, %104 : vector<8x384xf32>
    %107 = arith.divf %105, %106 : vector<8x384xf32>
    %108 = vector.extract_strided_slice %107 {offsets = [0, 0], sizes = [8, 128], strides = [1, 1]} : vector<8x384xf32> to vector<8x128xf32>
    %109 = vector.extract_strided_slice %107 {offsets = [0, 128], sizes = [8, 128], strides = [1, 1]} : vector<8x384xf32> to vector<8x128xf32>
    %110 = vector.extract_strided_slice %107 {offsets = [0, 256], sizes = [8, 128], strides = [1, 1]} : vector<8x384xf32> to vector<8x128xf32>
    %111 = vector.extract_strided_slice %101 {offsets = [0, 384], sizes = [8, 128], strides = [1, 1]} : vector<8x512xf32> to vector<8x128xf32>
    %112 = math.tanh %111 : vector<8x128xf32>
    %113 = arith.mulf %109, %85 : vector<8x128xf32>
    %114 = arith.mulf %108, %112 : vector<8x128xf32>
    %115 = arith.addf %113, %114 : vector<8x128xf32>
    %116 = math.tanh %115 : vector<8x128xf32>
    %117 = arith.mulf %110, %116 : vector<8x128xf32>
    %118 = vector.broadcast %c3_i32 : i32 to vector<8x1xi32>
    %119 = arith.cmpi slt, %118, %0 : vector<8x1xi32>
    %120 = arith.maximumf %93, %117 : vector<8x128xf32>
    %121 = vector.shape_cast %119 : vector<8x1xi1> to vector<8x1xi1>
    %122 = vector.broadcast %121 : vector<8x1xi1> to vector<8x128xi1>
    %123 = arith.select %122, %120, %93 : vector<8x128xi1>, vector<8x128xf32>
    %c4_i32 = arith.constant 4 : i32
    %c8_i32_26 = arith.constant 8 : i32
    %124 = arith.muli %c4_i32, %c8_i32_26 : i32
    %125 = tpu.assume_multiple %124, 8 : i32
    %126 = arith.index_cast %125 : i32 to index
    %c0_27 = arith.constant 0 : index
    %127 = vector.load %arg1[%126, %c0_27] : memref<64x512xf32, #tpu.memory_space<vmem>>, vector<8x512xf32>
    %128 = arith.truncf %117 : vector<8x128xf32> to vector<8x128xbf16>
    %c0_28 = arith.constant 0 : index
    %c0_29 = arith.constant 0 : index
    %129 = vector.load %arg3[%c0_28, %c0_29] : memref<128x512xbf16, #tpu.memory_space<vmem>>, vector<128x512xbf16>
    %cst_30 = arith.constant dense<0.000000e+00> : vector<8x512xf32>
    %130 = tpu.matmul %128, %129, %cst_30 {dimension_numbers = #tpu.dot_dimension_numbers<[1], [0], [0], [1], [0, 0, 1, 1], [], []>} : vector<8x128xbf16>, vector<128x512xbf16>, vector<8x512xf32> -> vector<8x512xf32>
    %131 = arith.addf %127, %130 : vector<8x512xf32>
    %132 = vector.extract_strided_slice %131 {offsets = [0, 0], sizes = [8, 384], strides = [1, 1]} : vector<8x512xf32> to vector<8x384xf32>
    %133 = arith.negf %132 : vector<8x384xf32>
    %134 = math.exp %133 : vector<8x384xf32>
    %cst_31 = arith.constant 1.000000e+00 : f32
    %135 = vector.broadcast %cst_31 : f32 to vector<8x384xf32>
    %136 = arith.addf %135, %134 : vector<8x384xf32>
    %137 = arith.divf %135, %136 : vector<8x384xf32>
    %138 = vector.extract_strided_slice %137 {offsets = [0, 0], sizes = [8, 128], strides = [1, 1]} : vector<8x384xf32> to vector<8x128xf32>
    %139 = vector.extract_strided_slice %137 {offsets = [0, 128], sizes = [8, 128], strides = [1, 1]} : vector<8x384xf32> to vector<8x128xf32>
    %140 = vector.extract_strided_slice %137 {offsets = [0, 256], sizes = [8, 128], strides = [1, 1]} : vector<8x384xf32> to vector<8x128xf32>
    %141 = vector.extract_strided_slice %131 {offsets = [0, 384], sizes = [8, 128], strides = [1, 1]} : vector<8x512xf32> to vector<8x128xf32>
    %142 = math.tanh %141 : vector<8x128xf32>
    %143 = arith.mulf %139, %115 : vector<8x128xf32>
    %144 = arith.mulf %138, %142 : vector<8x128xf32>
    %145 = arith.addf %143, %144 : vector<8x128xf32>
    %146 = math.tanh %145 : vector<8x128xf32>
    %147 = arith.mulf %140, %146 : vector<8x128xf32>
    %148 = vector.broadcast %c4_i32 : i32 to vector<8x1xi32>
    %149 = arith.cmpi slt, %148, %0 : vector<8x1xi32>
    %150 = arith.maximumf %123, %147 : vector<8x128xf32>
    %151 = vector.shape_cast %149 : vector<8x1xi1> to vector<8x1xi1>
    %152 = vector.broadcast %151 : vector<8x1xi1> to vector<8x128xi1>
    %153 = arith.select %152, %150, %123 : vector<8x128xi1>, vector<8x128xf32>
    %c5_i32 = arith.constant 5 : i32
    %c8_i32_32 = arith.constant 8 : i32
    %154 = arith.muli %c5_i32, %c8_i32_32 : i32
    %155 = tpu.assume_multiple %154, 8 : i32
    %156 = arith.index_cast %155 : i32 to index
    %c0_33 = arith.constant 0 : index
    %157 = vector.load %arg1[%156, %c0_33] : memref<64x512xf32, #tpu.memory_space<vmem>>, vector<8x512xf32>
    %158 = arith.truncf %147 : vector<8x128xf32> to vector<8x128xbf16>
    %c0_34 = arith.constant 0 : index
    %c0_35 = arith.constant 0 : index
    %159 = vector.load %arg3[%c0_34, %c0_35] : memref<128x512xbf16, #tpu.memory_space<vmem>>, vector<128x512xbf16>
    %cst_36 = arith.constant dense<0.000000e+00> : vector<8x512xf32>
    %160 = tpu.matmul %158, %159, %cst_36 {dimension_numbers = #tpu.dot_dimension_numbers<[1], [0], [0], [1], [0, 0, 1, 1], [], []>} : vector<8x128xbf16>, vector<128x512xbf16>, vector<8x512xf32> -> vector<8x512xf32>
    %161 = arith.addf %157, %160 : vector<8x512xf32>
    %162 = vector.extract_strided_slice %161 {offsets = [0, 0], sizes = [8, 384], strides = [1, 1]} : vector<8x512xf32> to vector<8x384xf32>
    %163 = arith.negf %162 : vector<8x384xf32>
    %164 = math.exp %163 : vector<8x384xf32>
    %cst_37 = arith.constant 1.000000e+00 : f32
    %165 = vector.broadcast %cst_37 : f32 to vector<8x384xf32>
    %166 = arith.addf %165, %164 : vector<8x384xf32>
    %167 = arith.divf %165, %166 : vector<8x384xf32>
    %168 = vector.extract_strided_slice %167 {offsets = [0, 0], sizes = [8, 128], strides = [1, 1]} : vector<8x384xf32> to vector<8x128xf32>
    %169 = vector.extract_strided_slice %167 {offsets = [0, 128], sizes = [8, 128], strides = [1, 1]} : vector<8x384xf32> to vector<8x128xf32>
    %170 = vector.extract_strided_slice %167 {offsets = [0, 256], sizes = [8, 128], strides = [1, 1]} : vector<8x384xf32> to vector<8x128xf32>
    %171 = vector.extract_strided_slice %161 {offsets = [0, 384], sizes = [8, 128], strides = [1, 1]} : vector<8x512xf32> to vector<8x128xf32>
    %172 = math.tanh %171 : vector<8x128xf32>
    %173 = arith.mulf %169, %145 : vector<8x128xf32>
    %174 = arith.mulf %168, %172 : vector<8x128xf32>
    %175 = arith.addf %173, %174 : vector<8x128xf32>
    %176 = math.tanh %175 : vector<8x128xf32>
    %177 = arith.mulf %170, %176 : vector<8x128xf32>
    %178 = vector.broadcast %c5_i32 : i32 to vector<8x1xi32>
    %179 = arith.cmpi slt, %178, %0 : vector<8x1xi32>
    %180 = arith.maximumf %153, %177 : vector<8x128xf32>
    %181 = vector.shape_cast %179 : vector<8x1xi1> to vector<8x1xi1>
    %182 = vector.broadcast %181 : vector<8x1xi1> to vector<8x128xi1>
    %183 = arith.select %182, %180, %153 : vector<8x128xi1>, vector<8x128xf32>
    %c6_i32 = arith.constant 6 : i32
    %c8_i32_38 = arith.constant 8 : i32
    %184 = arith.muli %c6_i32, %c8_i32_38 : i32
    %185 = tpu.assume_multiple %184, 8 : i32
    %186 = arith.index_cast %185 : i32 to index
    %c0_39 = arith.constant 0 : index
    %187 = vector.load %arg1[%186, %c0_39] : memref<64x512xf32, #tpu.memory_space<vmem>>, vector<8x512xf32>
    %188 = arith.truncf %177 : vector<8x128xf32> to vector<8x128xbf16>
    %c0_40 = arith.constant 0 : index
    %c0_41 = arith.constant 0 : index
    %189 = vector.load %arg3[%c0_40, %c0_41] : memref<128x512xbf16, #tpu.memory_space<vmem>>, vector<128x512xbf16>
    %cst_42 = arith.constant dense<0.000000e+00> : vector<8x512xf32>
    %190 = tpu.matmul %188, %189, %cst_42 {dimension_numbers = #tpu.dot_dimension_numbers<[1], [0], [0], [1], [0, 0, 1, 1], [], []>} : vector<8x128xbf16>, vector<128x512xbf16>, vector<8x512xf32> -> vector<8x512xf32>
    %191 = arith.addf %187, %190 : vector<8x512xf32>
    %192 = vector.extract_strided_slice %191 {offsets = [0, 0], sizes = [8, 384], strides = [1, 1]} : vector<8x512xf32> to vector<8x384xf32>
    %193 = arith.negf %192 : vector<8x384xf32>
    %194 = math.exp %193 : vector<8x384xf32>
    %cst_43 = arith.constant 1.000000e+00 : f32
    %195 = vector.broadcast %cst_43 : f32 to vector<8x384xf32>
    %196 = arith.addf %195, %194 : vector<8x384xf32>
    %197 = arith.divf %195, %196 : vector<8x384xf32>
    %198 = vector.extract_strided_slice %197 {offsets = [0, 0], sizes = [8, 128], strides = [1, 1]} : vector<8x384xf32> to vector<8x128xf32>
    %199 = vector.extract_strided_slice %197 {offsets = [0, 128], sizes = [8, 128], strides = [1, 1]} : vector<8x384xf32> to vector<8x128xf32>
    %200 = vector.extract_strided_slice %197 {offsets = [0, 256], sizes = [8, 128], strides = [1, 1]} : vector<8x384xf32> to vector<8x128xf32>
    %201 = vector.extract_strided_slice %191 {offsets = [0, 384], sizes = [8, 128], strides = [1, 1]} : vector<8x512xf32> to vector<8x128xf32>
    %202 = math.tanh %201 : vector<8x128xf32>
    %203 = arith.mulf %199, %175 : vector<8x128xf32>
    %204 = arith.mulf %198, %202 : vector<8x128xf32>
    %205 = arith.addf %203, %204 : vector<8x128xf32>
    %206 = math.tanh %205 : vector<8x128xf32>
    %207 = arith.mulf %200, %206 : vector<8x128xf32>
    %208 = vector.broadcast %c6_i32 : i32 to vector<8x1xi32>
    %209 = arith.cmpi slt, %208, %0 : vector<8x1xi32>
    %210 = arith.maximumf %183, %207 : vector<8x128xf32>
    %211 = vector.shape_cast %209 : vector<8x1xi1> to vector<8x1xi1>
    %212 = vector.broadcast %211 : vector<8x1xi1> to vector<8x128xi1>
    %213 = arith.select %212, %210, %183 : vector<8x128xi1>, vector<8x128xf32>
    %c7_i32 = arith.constant 7 : i32
    %c8_i32_44 = arith.constant 8 : i32
    %214 = arith.muli %c7_i32, %c8_i32_44 : i32
    %215 = tpu.assume_multiple %214, 8 : i32
    %216 = arith.index_cast %215 : i32 to index
    %c0_45 = arith.constant 0 : index
    %217 = vector.load %arg1[%216, %c0_45] : memref<64x512xf32, #tpu.memory_space<vmem>>, vector<8x512xf32>
    %218 = arith.truncf %207 : vector<8x128xf32> to vector<8x128xbf16>
    %c0_46 = arith.constant 0 : index
    %c0_47 = arith.constant 0 : index
    %219 = vector.load %arg3[%c0_46, %c0_47] : memref<128x512xbf16, #tpu.memory_space<vmem>>, vector<128x512xbf16>
    %cst_48 = arith.constant dense<0.000000e+00> : vector<8x512xf32>
    %220 = tpu.matmul %218, %219, %cst_48 {dimension_numbers = #tpu.dot_dimension_numbers<[1], [0], [0], [1], [0, 0, 1, 1], [], []>} : vector<8x128xbf16>, vector<128x512xbf16>, vector<8x512xf32> -> vector<8x512xf32>
    %221 = arith.addf %217, %220 : vector<8x512xf32>
    %222 = vector.extract_strided_slice %221 {offsets = [0, 0], sizes = [8, 384], strides = [1, 1]} : vector<8x512xf32> to vector<8x384xf32>
    %223 = arith.negf %222 : vector<8x384xf32>
    %224 = math.exp %223 : vector<8x384xf32>
    %cst_49 = arith.constant 1.000000e+00 : f32
    %225 = vector.broadcast %cst_49 : f32 to vector<8x384xf32>
    %226 = arith.addf %225, %224 : vector<8x384xf32>
    %227 = arith.divf %225, %226 : vector<8x384xf32>
    %228 = vector.extract_strided_slice %227 {offsets = [0, 0], sizes = [8, 128], strides = [1, 1]} : vector<8x384xf32> to vector<8x128xf32>
    %229 = vector.extract_strided_slice %227 {offsets = [0, 128], sizes = [8, 128], strides = [1, 1]} : vector<8x384xf32> to vector<8x128xf32>
    %230 = vector.extract_strided_slice %227 {offsets = [0, 256], sizes = [8, 128], strides = [1, 1]} : vector<8x384xf32> to vector<8x128xf32>
    %231 = vector.extract_strided_slice %221 {offsets = [0, 384], sizes = [8, 128], strides = [1, 1]} : vector<8x512xf32> to vector<8x128xf32>
    %232 = math.tanh %231 : vector<8x128xf32>
    %233 = arith.mulf %229, %205 : vector<8x128xf32>
    %234 = arith.mulf %228, %232 : vector<8x128xf32>
    %235 = arith.addf %233, %234 : vector<8x128xf32>
    %236 = math.tanh %235 : vector<8x128xf32>
    %237 = arith.mulf %230, %236 : vector<8x128xf32>
    %238 = vector.broadcast %c7_i32 : i32 to vector<8x1xi32>
    %239 = arith.cmpi slt, %238, %0 : vector<8x1xi32>
    %240 = arith.maximumf %213, %237 : vector<8x128xf32>
    %241 = vector.shape_cast %239 : vector<8x1xi1> to vector<8x1xi1>
    %242 = vector.broadcast %241 : vector<8x1xi1> to vector<8x128xi1>
    %243 = arith.select %242, %240, %213 : vector<8x128xi1>, vector<8x128xf32>
    %c8_i32_50 = arith.constant 8 : i32
    %c0_i32_51 = arith.constant 0 : i32
    %244 = vector.broadcast %c0_i32_51 : i32 to vector<8x1xi32>
    %245 = arith.cmpi sgt, %0, %244 : vector<8x1xi32>
    %cst_52 = arith.constant 0.000000e+00 : f32
    %246 = vector.shape_cast %245 : vector<8x1xi1> to vector<8x1xi1>
    %247 = vector.broadcast %246 : vector<8x1xi1> to vector<8x128xi1>
    %248 = vector.broadcast %cst_52 : f32 to vector<8x128xf32>
    %249 = arith.select %247, %243, %248 : vector<8x128xi1>, vector<8x128xf32>
    %250 = arith.truncf %249 : vector<8x128xf32> to vector<8x128xbf16>
    %c0_53 = arith.constant 0 : index
    %c0_54 = arith.constant 0 : index
    %251 = vector.load %arg4[%c0_53, %c0_54] : memref<128x128xbf16, #tpu.memory_space<vmem>>, vector<128x128xbf16>
    %cst_55 = arith.constant dense<0.000000e+00> : vector<8x128xf32>
    %252 = tpu.matmul %250, %251, %cst_55 {dimension_numbers = #tpu.dot_dimension_numbers<[1], [0], [0], [1], [0, 0, 1, 1], [], []>} : vector<8x128xbf16>, vector<128x128xbf16>, vector<8x128xf32> -> vector<8x128xf32>
    %c0_56 = arith.constant 0 : index
    %c0_57 = arith.constant 0 : index
    %253 = vector.load %arg5[%c0_56, %c0_57] : memref<1x128xf32, #tpu.memory_space<vmem>>, vector<1x128xf32>
    %254 = vector.broadcast %253 : vector<1x128xf32> to vector<8x128xf32>
    %255 = arith.addf %252, %254 : vector<8x128xf32>
    %c0_58 = arith.constant 0 : index
    %c0_59 = arith.constant 0 : index
    %256 = vector.load %arg6[%c0_58, %c0_59] : memref<8x128xf32, #tpu.memory_space<vmem>>, vector<8x128xf32>
    tpu.vector_store %arg6[%c0_58, %c0_59], %255 {strides = array<i32>} : memref<8x128xf32, #tpu.memory_space<vmem>>, vector<8x128xf32>,
    return
  }
  func.func @transform_0(%arg0: i32) -> (i32, i32) {
    %c0_i32 = arith.constant 0 : i32
    %c0_i32_0 = arith.constant 0 : i32
    %c0_i32_1 = arith.constant 0 : i32
    return %c0_i32, %c0_i32_0 : i32, i32
  }
  func.func @transform_1(%arg0: i32) -> (i32, i32) {
    %c0_i32 = arith.constant 0 : i32
    %c0_i32_0 = arith.constant 0 : i32
    %c0_i32_1 = arith.constant 0 : i32
    return %c0_i32, %c0_i32_0 : i32, i32
  }
  func.func @transform_2(%arg0: i32) -> (i32, i32) {
    %c0_i32 = arith.constant 0 : i32
    %c0_i32_0 = arith.constant 0 : i32
    %c0_i32_1 = arith.constant 0 : i32
    return %c0_i32, %c0_i32_0 : i32, i32
  }
  func.func @transform_3(%arg0: i32) -> (i32, i32) {
    %c0_i32 = arith.constant 0 : i32
    %c0_i32_0 = arith.constant 0 : i32
    %c0_i32_1 = arith.constant 0 : i32
    return %c0_i32, %c0_i32_0 : i32, i32
  }
  func.func @transform_4(%arg0: i32) -> (i32, i32) {
    %c0_i32 = arith.constant 0 : i32
    %c0_i32_0 = arith.constant 0 : i32
    %c0_i32_1 = arith.constant 0 : i32
    return %c0_i32, %c0_i32_0 : i32, i32
  }
  func.func @transform_5(%arg0: i32) -> (i32, i32) {
    %c0_i32 = arith.constant 0 : i32
    %c0_i32_0 = arith.constant 0 : i32
    %c0_i32_1 = arith.constant 0 : i32
    return %c0_i32, %c0_i32_0 : i32, i32
  }
}

</mosaic_0001>

<llo_original>
// kernel: char_rnn_classifier_pallas.1
$region0: #{char_rnn_classifier_pallas.1}
  #allocation0 [shape = 'u32[]', space=smem, size = 0x4, offset = 0x4, fixed_abs, tag = 'smem constant byte address 0x4 - core index']
  #allocation1 [shape = 'u32[144,128]{1,0:T(1,128)}', space=vmem, size = 0x12000, scoped, tag = 'internal scratch']
  %s0 = inlined_call_operand.vmem [shape: f32[64,512], index: 0, kind: input, shape index: {}]
  %s1 = inlined_call_operand.vmem [shape: s32[8,1], index: 1, kind: input, shape index: {}]
  %s2 = inlined_call_operand.vmem [shape: bf16[128,512], index: 2, kind: input, shape index: {}]
  %s3 = inlined_call_operand.vmem [shape: bf16[128,128], index: 3, kind: input, shape index: {}]
  %s4 = inlined_call_operand.vmem [shape: f32[1,128], index: 4, kind: input, shape index: {}]
  %s5 = inlined_call_operand.vmem [shape: f32[8,128], index: 5, kind: output, shape index: {}]
  %s6 = sld [smem:[#allocation0]]
  $region30: #{char_rnn_classifier_pallas.1} parent=0
    _
  %s8 = ssub.s32 1, %s6
  %s9 = scalar_select 0, %s8, %s6
  // Predicated region
  $region2: #{char_rnn_classifier_pallas.1} parent=0 // pred_check
    _
  $region3: #{char_rnn_classifier_pallas.1} parent=0 // pred_check_branch
    %11 = sbr.rel (0) target = $region5
  $region4: #{char_rnn_classifier_pallas.1} parent=0 // pred_region
    _
  $region5: #{char_rnn_classifier_pallas.1} parent=0 // pred_fallthru
    _
  // Predicated region
  $region6: #{char_rnn_classifier_pallas.1} parent=0 // pred_check
    _
  $region7: #{char_rnn_classifier_pallas.1} parent=0 // pred_check_branch
    %13 = sbr.rel (0) target = $region9
  $region8: #{char_rnn_classifier_pallas.1} parent=0 // pred_region
    _
  $region9: #{char_rnn_classifier_pallas.1} parent=0 // pred_fallthru
    _
  // Predicated region
  $region10: #{char_rnn_classifier_pallas.1} parent=0 // pred_check
    _
  $region11: #{char_rnn_classifier_pallas.1} parent=0 // pred_check_branch
    %15 = sbr.rel (0) target = $region13
  $region12: #{char_rnn_classifier_pallas.1} parent=0 // pred_region
    _
  $region13: #{char_rnn_classifier_pallas.1} parent=0 // pred_fallthru
    _
  // Predicated region
  $region14: #{char_rnn_classifier_pallas.1} parent=0 // pred_check
    _
  $region15: #{char_rnn_classifier_pallas.1} parent=0 // pred_check_branch
    %17 = sbr.rel (0) target = $region17
  $region16: #{char_rnn_classifier_pallas.1} parent=0 // pred_region
    _
  $region17: #{char_rnn_classifier_pallas.1} parent=0 // pred_fallthru
    _
  // Predicated region
  $region18: #{char_rnn_classifier_pallas.1} parent=0 // pred_check
    _
  $region19: #{char_rnn_classifier_pallas.1} parent=0 // pred_check_branch
    %19 = sbr.rel (0) target = $region21
  $region20: #{char_rnn_classifier_pallas.1} parent=0 // pred_region
    _
  $region21: #{char_rnn_classifier_pallas.1} parent=0 // pred_fallthru
    _
  %v21 = vld [vmem:[%s1] sm:$0xff]
  %s22 = smul.u32 0, 4
  %s23 = smul.addr %s22, 8
  %s24 = scalar_lea.vmem %s0, %s23
  %v25 = vld [vmem:[%s24] sm:$0xff]
  %v26 = vld [vmem:[%s24 + $0x8] sm:$0xff]
  %v27 = vld [vmem:[%s24 + $0x10] sm:$0xff]
  %v28 = vld [vmem:[%s24 + $0x18] sm:$0xff]
  %v29 = vld [vmem:[%s2] sm:$0xff]
  %v30 = vld [vmem:[%s2 + $0x8] sm:$0xff]
  %v31 = vld [vmem:[%s2 + $0x10] sm:$0xff]
  %v32 = vld [vmem:[%s2 + $0x18] sm:$0xff]
  %v33 = vld [vmem:[%s2 + $0x20] sm:$0xff]
  %v34 = vld [vmem:[%s2 + $0x28] sm:$0xff]
  %v35 = vld [vmem:[%s2 + $0x30] sm:$0xff]
  %v36 = vld [vmem:[%s2 + $0x38] sm:$0xff]
  %v37 = vld [vmem:[%s2 + $0x40] sm:$0xff]
  %v38 = vld [vmem:[%s2 + $0x48] sm:$0xff]
  %v39 = vld [vmem:[%s2 + $0x50] sm:$0xff]
  %v40 = vld [vmem:[%s2 + $0x58] sm:$0xff]
  %v41 = vld [vmem:[%s2 + $0x60] sm:$0xff]
  %v42 = vld [vmem:[%s2 + $0x68] sm:$0xff]
  %v43 = vld [vmem:[%s2 + $0x70] sm:$0xff]
  %v44 = vld [vmem:[%s2 + $0x78] sm:$0xff]
  %v45 = vld [vmem:[%s2 + $0x80] sm:$0xff]
  %v46 = vld [vmem:[%s2 + $0x88] sm:$0xff]
  %v47 = vld [vmem:[%s2 + $0x90] sm:$0xff]
  %v48 = vld [vmem:[%s2 + $0x98] sm:$0xff]
  %v49 = vld [vmem:[%s2 + $0xa0] sm:$0xff]
  %v50 = vld [vmem:[%s2 + $0xa8] sm:$0xff]
  %v51 = vld [vmem:[%s2 + $0xb0] sm:$0xff]
  %v52 = vld [vmem:[%s2 + $0xb8] sm:$0xff]
  %v53 = vld [vmem:[%s2 + $0xc0] sm:$0xff]
  %v54 = vld [vmem:[%s2 + $0xc8] sm:$0xff]
  %v55 = vld [vmem:[%s2 + $0xd0] sm:$0xff]
  %v56 = vld [vmem:[%s2 + $0xd8] sm:$0xff]
  %v57 = vld [vmem:[%s2 + $0xe0] sm:$0xff]
  %v58 = vld [vmem:[%s2 + $0xe8] sm:$0xff]
  %v59 = vld [vmem:[%s2 + $0xf0] sm:$0xff]
  %v60 = vld [vmem:[%s2 + $0xf8] sm:$0xff]
  %v93 = vunpack.c.l.b16 %v29
  %v94 = vunpack.c.h.b16 %v29
  %v95 = vunpack.c.l.b16 %v30
  %v96 = vunpack.c.h.b16 %v30
  %v97 = vunpack.c.l.b16 %v31
  %v98 = vunpack.c.h.b16 %v31
  %v99 = vunpack.c.l.b16 %v32
  %v100 = vunpack.c.h.b16 %v32
  %v101 = vunpack.c.l.b16 %v33
  %v102 = vunpack.c.h.b16 %v33
  %v103 = vunpack.c.l.b16 %v34
  %v104 = vunpack.c.h.b16 %v34
  %v105 = vunpack.c.l.b16 %v35
  %v106 = vunpack.c.h.b16 %v35
  %v107 = vunpack.c.l.b16 %v36
  %v108 = vunpack.c.h.b16 %v36
  %v109 = vunpack.c.l.b16 %v37
  %v110 = vunpack.c.h.b16 %v37
  %v111 = vunpack.c.l.b16 %v38
  %v112 = vunpack.c.h.b16 %v38
  %v113 = vunpack.c.l.b16 %v39
  %v114 = vunpack.c.h.b16 %v39
  %v115 = vunpack.c.l.b16 %v40
  %v116 = vunpack.c.h.b16 %v40
  %v117 = vunpack.c.l.b16 %v41
  %v118 = vunpack.c.h.b16 %v41
  %v119 = vunpack.c.l.b16 %v42
  %v120 = vunpack.c.h.b16 %v42
  %v121 = vunpack.c.l.b16 %v43
  %v122 = vunpack.c.h.b16 %v43
  %v123 = vunpack.c.l.b16 %v44
  %v124 = vunpack.c.h.b16 %v44
  %v125 = vunpack.c.l.b16 %v45
  %v126 = vunpack.c.h.b16 %v45
  %v127 = vunpack.c.l.b16 %v46
  %v128 = vunpack.c.h.b16 %v46
  %v129 = vunpack.c.l.b16 %v47
  %v130 = vunpack.c.h.b16 %v47
  %v131 = vunpack.c.l.b16 %v48
  %v132 = vunpack.c.h.b16 %v48
  %v133 = vunpack.c.l.b16 %v49
  %v134 = vunpack.c.h.b16 %v49
  %v135 = vunpack.c.l.b16 %v50
  %v136 = vunpack.c.h.b16 %v50
  %v137 = vunpack.c.l.b16 %v51
  %v138 = vunpack.c.h.b16 %v51
  %v139 = vunpack.c.l.b16 %v52
  %v140 = vunpack.c.h.b16 %v52
  %v141 = vunpack.c.l.b16 %v53
  %v142 = vunpack.c.h.b16 %v53
  %v143 = vunpack.c.l.b16 %v54
  %v144 = vunpack.c.h.b16 %v54
  %v145 = vunpack.c.l.b16 %v55
  %v146 = vunpack.c.h.b16 %v55
  %v147 = vunpack.c.l.b16 %v56
  %v148 = vunpack.c.h.b16 %v56
  %v149 = vunpack.c.l.b16 %v57
  %v150 = vunpack.c.h.b16 %v57
  %v151 = vunpack.c.l.b16 %v58
  %v152 = vunpack.c.h.b16 %v58
  %v153 = vunpack.c.l.b16 %v59
  %v154 = vunpack.c.h.b16 %v59
  %v155 = vunpack.c.l.b16 %v60
  %v156 = vunpack.c.h.b16 %v60
  %v157 = vpack.c.b16 %v97, %v93
  %v158 = vpack.c.b16 %v98, %v94
  %v159 = vpack.c.b16 %v99, %v95
  %v160 = vpack.c.b16 %v100, %v96
  %v161 = vpack.c.b16 %v105, %v101
  %v162 = vpack.c.b16 %v106, %v102
  %v163 = vpack.c.b16 %v107, %v103
  %v164 = vpack.c.b16 %v108, %v104
  %v165 = vpack.c.b16 %v113, %v109
  %v166 = vpack.c.b16 %v114, %v110
  %v167 = vpack.c.b16 %v115, %v111
  %v168 = vpack.c.b16 %v116, %v112
  %v169 = vpack.c.b16 %v121, %v117
  %v170 = vpack.c.b16 %v122, %v118
  %v171 = vpack.c.b16 %v123, %v119
  %v172 = vpack.c.b16 %v124, %v120
  %v173 = vpack.c.b16 %v129, %v125
  %v174 = vpack.c.b16 %v130, %v126
  %v175 = vpack.c.b16 %v131, %v127
  %v176 = vpack.c.b16 %v132, %v128
  %v177 = vpack.c.b16 %v137, %v133
  %v178 = vpack.c.b16 %v138, %v134
  %v179 = vpack.c.b16 %v139, %v135
  %v180 = vpack.c.b16 %v140, %v136
  %v181 = vpack.c.b16 %v145, %v141
  %v182 = vpack.c.b16 %v146, %v142
  %v183 = vpack.c.b16 %v147, %v143
  %v184 = vpack.c.b16 %v148, %v144
  %v185 = vpack.c.b16 %v153, %v149
  %v186 = vpack.c.b16 %v154, %v150
  %v187 = vpack.c.b16 %v155, %v151
  %v188 = vpack.c.b16 %v156, %v152
  %221 = vmatprep.subr.bf16.mxu0 %v158
  %222 = vmatpush1.bf16.msra.mxu0 %v157
  %223 = vmatprep.subr.bf16.mxu0 %v162
  %224 = vmatpush1.bf16.msra.mxu0 %v161
  %225 = vmatprep.subr.bf16.mxu0 %v166
  %226 = vmatpush1.bf16.msra.mxu0 %v165
  %227 = vmatprep.subr.bf16.mxu0 %v170
  %228 = vmatpush1.bf16.msra.mxu0 %v169
  %229 = vmatprep.subr.bf16.mxu0 %v174
  %230 = vmatpush1.bf16.msra.mxu0 %v173
  %231 = vmatprep.subr.bf16.mxu0 %v178
  %232 = vmatpush1.bf16.msra.mxu0 %v177
  %233 = vmatprep.subr.bf16.mxu0 %v182
  %234 = vmatpush1.bf16.msra.mxu0 %v181
  %235 = vmatprep.subr.bf16.mxu0 %v186
  %236 = vmatpush1.bf16.msra.mxu0 %v185
  %237 = vmatprep.subr.bf16.mxu0 0
  %238 = vmatpush1.bf16.msra.mxu0 0
  %239 = vmatprep.subr.bf16.mxu0 0
  %240 = vmatpush1.bf16.msra.mxu0 0
  %241 = vmatprep.subr.bf16.mxu0 0
  %242 = vmatpush1.bf16.msra.mxu0 0
  %243 = vmatprep.subr.bf16.mxu0 0
  %244 = vmatpush1.bf16.msra.mxu0 0
  %245 = vmatprep.subr.bf16.mxu0 0
  %246 = vmatpush1.bf16.msra.mxu0 0
  %247 = vmatprep.subr.bf16.mxu0 0
  %248 = vmatpush1.bf16.msra.mxu0 0
  %249 = vmatprep.subr.bf16.mxu0 0
  %250 = vmatpush1.bf16.msra.mxu0 0
  %251 = vmatprep.subr.bf16.mxu0 0
  %252 = vmatpush1.bf16.msra.mxu0 0
  %253 = vmatprep.mubr.bf16.mxu0 0
  %254 = vmatmul.mubr.bf16.gmra.mrb[0].mxu0 0
  %v255 = vpop.f32.mrb[0].mxu0
  %v256 = vadd.f32 0.0, %v255
  %v257 = vpop.f32.mrb[0].mxu0
  %v258 = vadd.f32 0.0, %v257
  %v259 = vpop.f32.mrb[0].mxu0
  %v260 = vpop.f32.mrb[0].mxu0
  %261 = vdwg.mxu0
  %262 = vmatprep.subr.bf16.mxu0 %v160
  %263 = vmatpush1.bf16.msra.mxu0 %v159
  %264 = vmatprep.subr.bf16.mxu0 %v164
  %265 = vmatpush1.bf16.msra.mxu0 %v163
  %266 = vmatprep.subr.bf16.mxu0 %v168
  %267 = vmatpush1.bf16.msra.mxu0 %v167
  %268 = vmatprep.subr.bf16.mxu0 %v172
  %269 = vmatpush1.bf16.msra.mxu0 %v171
  %270 = vmatprep.subr.bf16.mxu0 %v176
  %271 = vmatpush1.bf16.msra.mxu0 %v175
  %272 = vmatprep.subr.bf16.mxu0 %v180
  %273 = vmatpush1.bf16.msra.mxu0 %v179
  %274 = vmatprep.subr.bf16.mxu0 %v184
  %275 = vmatpush1.bf16.msra.mxu0 %v183
  %276 = vmatprep.subr.bf16.mxu0 %v188
  %277 = vmatpush1.bf16.msra.mxu0 %v187
  %278 = vmatprep.subr.bf16.mxu0 0
  %279 = vmatpush1.bf16.msra.mxu0 0
  %280 = vmatprep.subr.bf16.mxu0 0
  %281 = vmatpush1.bf16.msra.mxu0 0
  %282 = vmatprep.subr.bf16.mxu0 0
  %283 = vmatpush1.bf16.msra.mxu0 0
  %284 = vmatprep.subr.bf16.mxu0 0
  %285 = vmatpush1.bf16.msra.mxu0 0
  %286 = vmatprep.subr.bf16.mxu0 0
  %287 = vmatpush1.bf16.msra.mxu0 0
  %288 = vmatprep.subr.bf16.mxu0 0
  %289 = vmatpush1.bf16.msra.mxu0 0
  %290 = vmatprep.subr.bf16.mxu0 0
  %291 = vmatpush1.bf16.msra.mxu0 0
  %292 = vmatprep.subr.bf16.mxu0 0
  %293 = vmatpush1.bf16.msra.mxu0 0
  %294 = vmatprep.mubr.bf16.mxu0 0
  %295 = vmatmul.mubr.bf16.gmra.mrb[0].mxu0 0
  %v296 = vpop.f32.mrb[0].mxu0
  %v297 = vadd.f32 0.0, %v296
  %v298 = vpop.f32.mrb[0].mxu0
  %v299 = vadd.f32 0.0, %v298
  %v300 = vpop.f32.mrb[0].mxu0
  %v301 = vpop.f32.mrb[0].mxu0
  %302 = vdwg.mxu0
  %v303 = vadd.f32 %v25, %v256
  %v304 = vadd.f32 %v26, %v258
  %v305 = vadd.f32 %v27, %v297
  %v306 = vadd.f32 %v28, %v299
  %v307 = vxor.u32 %v303, 2147483648
  %v308 = vxor.u32 %v304, 2147483648
  %v309 = vxor.u32 %v305, 2147483648
  %v310 = vmul.f32 %v307, 1.442695
  %v311 = vpow.pop %v310
  %v312 = vmul.f32 %v308, 1.442695
  %v313 = vpow.pop %v312
  %v314 = vmul.f32 %v309, 1.442695
  %v315 = vpow.pop %v314
  %v316 = vadd.f32 %v311, 1.0
  %v317 = vadd.f32 %v313, 1.0
  %v318 = vadd.f32 %v315, 1.0
  %v319 = vrcp.pop %v316
  %v320 = vmul.f32 1.0, %v319
  %v321 = vrcp.pop %v317
  %v322 = vmul.f32 1.0, %v321
  %v323 = vrcp.pop %v318
  %v324 = vmul.f32 1.0, %v323
  %v325 = vtanh.pop %v306
  %v326 = vmul.f32 %v322, 0.0
  %v327 = vmul.f32 %v320, %v325
  %v328 = vadd.f32 %v326, %v327
  %v329 = vtanh.pop %v328
  %v330 = vmul.f32 %v324, %v329
  %vm331 = vcmp.gt.s32.totalorder %v21, 0
  %v332 = vmax.f32 %v330, -1e+30
  %v333 = vsel %vm331, 1, 0
  %334 = vset.pattern.permute.xlu0 0
  %335 = vperm.xlu0 %334, %v333
  %v336 = vpop.permute.xlu0 %335
  %vm337 = vcmp.eq.s32.totalorder %v336, 1
  %v338 = vsel %vm337, %v332, -1e+30
  %s339 = smul.u32 1, 4
  %s340 = smul.addr %s339, 8
  %s341 = scalar_lea.vmem %s0, %s340
  %v342 = vld [vmem:[%s341] sm:$0xff]
  %v343 = vld [vmem:[%s341 + $0x8] sm:$0xff]
  %v344 = vld [vmem:[%s341 + $0x10] sm:$0xff]
  %v345 = vld [vmem:[%s341 + $0x18] sm:$0xff]
  %v346 = vpack.c.bf16 %v330, %v330
  %347 = vmatprep.subr.bf16.mxu0 %v158
  %348 = vmatpush1.bf16.msra.mxu0 %v157
  %349 = vmatprep.subr.bf16.mxu0 %v162
  %350 = vmatpush1.bf16.msra.mxu0 %v161
  %351 = vmatprep.subr.bf16.mxu0 %v166
  %352 = vmatpush1.bf16.msra.mxu0 %v165
  %353 = vmatprep.subr.bf16.mxu0 %v170
  %354 = vmatpush1.bf16.msra.mxu0 %v169
  %355 = vmatprep.subr.bf16.mxu0 %v174
  %356 = vmatpush1.bf16.msra.mxu0 %v173
  %357 = vmatprep.subr.bf16.mxu0 %v178
  %358 = vmatpush1.bf16.msra.mxu0 %v177
  %359 = vmatprep.subr.bf16.mxu0 %v182
  %360 = vmatpush1.bf16.msra.mxu0 %v181
  %361 = vmatprep.subr.bf16.mxu0 %v186
  %362 = vmatpush1.bf16.msra.mxu0 %v185
  %363 = vmatprep.subr.bf16.mxu0 0
  %364 = vmatpush1.bf16.msra.mxu0 0
  %365 = vmatprep.subr.bf16.mxu0 0
  %366 = vmatpush1.bf16.msra.mxu0 0
  %367 = vmatprep.subr.bf16.mxu0 0
  %368 = vmatpush1.bf16.msra.mxu0 0
  %369 = vmatprep.subr.bf16.mxu0 0
  %370 = vmatpush1.bf16.msra.mxu0 0
  %371 = vmatprep.subr.bf16.mxu0 0
  %372 = vmatpush1.bf16.msra.mxu0 0
  %373 = vmatprep.subr.bf16.mxu0 0
  %374 = vmatpush1.bf16.msra.mxu0 0
  %375 = vmatprep.subr.bf16.mxu0 0
  %376 = vmatpush1.bf16.msra.mxu0 0
  %377 = vmatprep.subr.bf16.mxu0 0
  %378 = vmatpush1.bf16.msra.mxu0 0
  %379 = vmatprep.mubr.bf16.mxu0 0
  %380 = vmatmul.mubr.bf16.gmra.mrb[0].mxu0 %v346
  %v381 = vpop.f32.mrb[0].mxu0
  %v382 = vadd.f32 0.0, %v381
  %v383 = vpop.f32.mrb[0].mxu0
  %v384 = vadd.f32 0.0, %v383
  %v385 = vpop.f32.mrb[0].mxu0
  %v386 = vpop.f32.mrb[0].mxu0
  %387 = vdwg.mxu0
  %388 = vmatprep.subr.bf16.mxu0 %v160
  %389 = vmatpush1.bf16.msra.mxu0 %v159
  %390 = vmatprep.subr.bf16.mxu0 %v164
  %391 = vmatpush1.bf16.msra.mxu0 %v163
  %392 = vmatprep.subr.bf16.mxu0 %v168
  %393 = vmatpush1.bf16.msra.mxu0 %v167
  %394 = vmatprep.subr.bf16.mxu0 %v172
  %395 = vmatpush1.bf16.msra.mxu0 %v171
  %396 = vmatprep.subr.bf16.mxu0 %v176
  %397 = vmatpush1.bf16.msra.mxu0 %v175
  %398 = vmatprep.subr.bf16.mxu0 %v180
  %399 = vmatpush1.bf16.msra.mxu0 %v179
  %400 = vmatprep.subr.bf16.mxu0 %v184
  %401 = vmatpush1.bf16.msra.mxu0 %v183
  %402 = vmatprep.subr.bf16.mxu0 %v188
  %403 = vmatpush1.bf16.msra.mxu0 %v187
  %404 = vmatprep.subr.bf16.mxu0 0
  %405 = vmatpush1.bf16.msra.mxu0 0
  %406 = vmatprep.subr.bf16.mxu0 0
  %407 = vmatpush1.bf16.msra.mxu0 0
  %408 = vmatprep.subr.bf16.mxu0 0
  %409 = vmatpush1.bf16.msra.mxu0 0
  %410 = vmatprep.subr.bf16.mxu0 0
  %411 = vmatpush1.bf16.msra.mxu0 0
  %412 = vmatprep.subr.bf16.mxu0 0
  %413 = vmatpush1.bf16.msra.mxu0 0
  %414 = vmatprep.subr.bf16.mxu0 0
  %415 = vmatpush1.bf16.msra.mxu0 0
  %416 = vmatprep.subr.bf16.mxu0 0
  %417 = vmatpush1.bf16.msra.mxu0 0
  %418 = vmatprep.subr.bf16.mxu0 0
  %419 = vmatpush1.bf16.msra.mxu0 0
  %420 = vmatprep.mubr.bf16.mxu0 0
  %421 = vmatmul.mubr.bf16.gmra.mrb[0].mxu0 %v346
  %v422 = vpop.f32.mrb[0].mxu0
  %v423 = vadd.f32 0.0, %v422
  %v424 = vpop.f32.mrb[0].mxu0
  %v425 = vadd.f32 0.0, %v424
  %v426 = vpop.f32.mrb[0].mxu0
  %v427 = vpop.f32.mrb[0].mxu0
  %428 = vdwg.mxu0
  %v429 = vadd.f32 %v342, %v382
  %v430 = vadd.f32 %v343, %v384
  %v431 = vadd.f32 %v344, %v423
  %v432 = vadd.f32 %v345, %v425
  %v433 = vxor.u32 %v429, 2147483648
  %v434 = vxor.u32 %v430, 2147483648
  %v435 = vxor.u32 %v431, 2147483648
  %v436 = vmul.f32 %v433, 1.442695
  %v437 = vpow.pop %v436
  %v438 = vmul.f32 %v434, 1.442695
  %v439 = vpow.pop %v438
  %v440 = vmul.f32 %v435, 1.442695
  %v441 = vpow.pop %v440
  %v442 = vadd.f32 %v437, 1.0
  %v443 = vadd.f32 %v439, 1.0
  %v444 = vadd.f32 %v441, 1.0
  %v445 = vrcp.pop %v442
  %v446 = vmul.f32 1.0, %v445
  %v447 = vrcp.pop %v443
  %v448 = vmul.f32 1.0, %v447
  %v449 = vrcp.pop %v444
  %v450 = vmul.f32 1.0, %v449
  %v451 = vtanh.pop %v432
  %v452 = vmul.f32 %v448, %v328
  %v453 = vmul.f32 %v446, %v451
  %v454 = vadd.f32 %v452, %v453
  %v455 = vtanh.pop %v454
  %v456 = vmul.f32 %v450, %v455
  %vm457 = vcmp.gt.s32.totalorder %v21, 1
  %v458 = vmax.f32 %v338, %v456
  %v459 = vsel %vm457, 1, 0
  %460 = vset.pattern.permute.xlu0 0
  %461 = vperm.xlu0 %460, %v459
  %v462 = vpop.permute.xlu0 %461
  %vm463 = vcmp.eq.s32.totalorder %v462, 1
  %v464 = vsel %vm463, %v458, %v338
  %s465 = smul.u32 2, 4
  %s466 = smul.addr %s465, 8
  %s467 = scalar_lea.vmem %s0, %s466
  %v468 = vld [vmem:[%s467] sm:$0xff]
  %v469 = vld [vmem:[%s467 + $0x8] sm:$0xff]
  %v470 = vld [vmem:[%s467 + $0x10] sm:$0xff]
  %v471 = vld [vmem:[%s467 + $0x18] sm:$0xff]
  %v472 = vpack.c.bf16 %v456, %v456
  %473 = vmatprep.subr.bf16.mxu0 %v158
  %474 = vmatpush1.bf16.msra.mxu0 %v157
  %475 = vmatprep.subr.bf16.mxu0 %v162
  %476 = vmatpush1.bf16.msra.mxu0 %v161
  %477 = vmatprep.subr.bf16.mxu0 %v166
  %478 = vmatpush1.bf16.msra.mxu0 %v165
  %479 = vmatprep.subr.bf16.mxu0 %v170
  %480 = vmatpush1.bf16.msra.mxu0 %v169
  %481 = vmatprep.subr.bf16.mxu0 %v174
  %482 = vmatpush1.bf16.msra.mxu0 %v173
  %483 = vmatprep.subr.bf16.mxu0 %v178
  %484 = vmatpush1.bf16.msra.mxu0 %v177
  %485 = vmatprep.subr.bf16.mxu0 %v182
  %486 = vmatpush1.bf16.msra.mxu0 %v181
  %487 = vmatprep.subr.bf16.mxu0 %v186
  %488 = vmatpush1.bf16.msra.mxu0 %v185
  %489 = vmatprep.subr.bf16.mxu0 0
  %490 = vmatpush1.bf16.msra.mxu0 0
  %491 = vmatprep.subr.bf16.mxu0 0
  %492 = vmatpush1.bf16.msra.mxu0 0
  %493 = vmatprep.subr.bf16.mxu0 0
  %494 = vmatpush1.bf16.msra.mxu0 0
  %495 = vmatprep.subr.bf16.mxu0 0
  %496 = vmatpush1.bf16.msra.mxu0 0
  %497 = vmatprep.subr.bf16.mxu0 0
  %498 = vmatpush1.bf16.msra.mxu0 0
  %499 = vmatprep.subr.bf16.mxu0 0
  %500 = vmatpush1.bf16.msra.mxu0 0
  %501 = vmatprep.subr.bf16.mxu0 0
  %502 = vmatpush1.bf16.msra.mxu0 0
  %503 = vmatprep.subr.bf16.mxu0 0
  %504 = vmatpush1.bf16.msra.mxu0 0
  %505 = vmatprep.mubr.bf16.mxu0 0
  %506 = vmatmul.mubr.bf16.gmra.mrb[0].mxu0 %v472
  %v507 = vpop.f32.mrb[0].mxu0
  %v508 = vadd.f32 0.0, %v507
  %v509 = vpop.f32.mrb[0].mxu0
  %v510 = vadd.f32 0.0, %v509
  %v511 = vpop.f32.mrb[0].mxu0
  %v512 = vpop.f32.mrb[0].mxu0
  %513 = vdwg.mxu0
  %514 = vmatprep.subr.bf16.mxu0 %v160
  %515 = vmatpush1.bf16.msra.mxu0 %v159
  %516 = vmatprep.subr.bf16.mxu0 %v164
  %517 = vmatpush1.bf16.msra.mxu0 %v163
  %518 = vmatprep.subr.bf16.mxu0 %v168
  %519 = vmatpush1.bf16.msra.mxu0 %v167
  %520 = vmatprep.subr.bf16.mxu0 %v172
  %521 = vmatpush1.bf16.msra.mxu0 %v171
  %522 = vmatprep.subr.bf16.mxu0 %v176
  %523 = vmatpush1.bf16.msra.mxu0 %v175
  %524 = vmatprep.subr.bf16.mxu0 %v180
  %525 = vmatpush1.bf16.msra.mxu0 %v179
  %526 = vmatprep.subr.bf16.mxu0 %v184
  %527 = vmatpush1.bf16.msra.mxu0 %v183
  %528 = vmatprep.subr.bf16.mxu0 %v188
  %529 = vmatpush1.bf16.msra.mxu0 %v187
  %530 = vmatprep.subr.bf16.mxu0 0
  %531 = vmatpush1.bf16.msra.mxu0 0
  %532 = vmatprep.subr.bf16.mxu0 0
  %533 = vmatpush1.bf16.msra.mxu0 0
  %534 = vmatprep.subr.bf16.mxu0 0
  %535 = vmatpush1.bf16.msra.mxu0 0
  %536 = vmatprep.subr.bf16.mxu0 0
  %537 = vmatpush1.bf16.msra.mxu0 0
  %538 = vmatprep.subr.bf16.mxu0 0
  %539 = vmatpush1.bf16.msra.mxu0 0
  %540 = vmatprep.subr.bf16.mxu0 0
  %541 = vmatpush1.bf16.msra.mxu0 0
  %542 = vmatprep.subr.bf16.mxu0 0
  %543 = vmatpush1.bf16.msra.mxu0 0
  %544 = vmatprep.subr.bf16.mxu0 0
  %545 = vmatpush1.bf16.msra.mxu0 0
  %546 = vmatprep.mubr.bf16.mxu0 0
  %547 = vmatmul.mubr.bf16.gmra.mrb[0].mxu0 %v472
  %v548 = vpop.f32.mrb[0].mxu0
  %v549 = vadd.f32 0.0, %v548
  %v550 = vpop.f32.mrb[0].mxu0
  %v551 = vadd.f32 0.0, %v550
  %v552 = vpop.f32.mrb[0].mxu0
  %v553 = vpop.f32.mrb[0].mxu0
  %554 = vdwg.mxu0
  %v555 = vadd.f32 %v468, %v508
  %v556 = vadd.f32 %v469, %v510
  %v557 = vadd.f32 %v470, %v549
  %v558 = vadd.f32 %v471, %v551
  %v559 = vxor.u32 %v555, 2147483648
  %v560 = vxor.u32 %v556, 2147483648
  %v561 = vxor.u32 %v557, 2147483648
  %v562 = vmul.f32 %v559, 1.442695
  %v563 = vpow.pop %v562
  %v564 = vmul.f32 %v560, 1.442695
  %v565 = vpow.pop %v564
  %v566 = vmul.f32 %v561, 1.442695
  %v567 = vpow.pop %v566
  %v568 = vadd.f32 %v563, 1.0
  %v569 = vadd.f32 %v565, 1.0
  %v570 = vadd.f32 %v567, 1.0
  %v571 = vrcp.pop %v568
  %v572 = vmul.f32 1.0, %v571
  %v573 = vrcp.pop %v569
  %v574 = vmul.f32 1.0, %v573
  %v575 = vrcp.pop %v570
  %v576 = vmul.f32 1.0, %v575
  %v577 = vtanh.pop %v558
  %v578 = vmul.f32 %v574, %v454
  %v579 = vmul.f32 %v572, %v577
  %v580 = vadd.f32 %v578, %v579
  %v581 = vtanh.pop %v580
  %v582 = vmul.f32 %v576, %v581
  %vm583 = vcmp.gt.s32.totalorder %v21, 2
  %v584 = vmax.f32 %v464, %v582
  %v585 = vsel %vm583, 1, 0
  %586 = vset.pattern.permute.xlu0 0
  %587 = vperm.xlu0 %586, %v585
  %v588 = vpop.permute.xlu0 %587
  %vm589 = vcmp.eq.s32.totalorder %v588, 1
  %v590 = vsel %vm589, %v584, %v464
  %s591 = smul.u32 3, 4
  %s592 = smul.addr %s591, 8
  %s593 = scalar_lea.vmem %s0, %s592
  %v594 = vld [vmem:[%s593] sm:$0xff]
  %v595 = vld [vmem:[%s593 + $0x8] sm:$0xff]
  %v596 = vld [vmem:[%s593 + $0x10] sm:$0xff]
  %v597 = vld [vmem:[%s593 + $0x18] sm:$0xff]
  %v598 = vpack.c.bf16 %v582, %v582
  %599 = vmatprep.subr.bf16.mxu0 %v158
  %600 = vmatpush1.bf16.msra.mxu0 %v157
  %601 = vmatprep.subr.bf16.mxu0 %v162
  %602 = vmatpush1.bf16.msra.mxu0 %v161
  %603 = vmatprep.subr.bf16.mxu0 %v166
  %604 = vmatpush1.bf16.msra.mxu0 %v165
  %605 = vmatprep.subr.bf16.mxu0 %v170
  %606 = vmatpush1.bf16.msra.mxu0 %v169
  %607 = vmatprep.subr.bf16.mxu0 %v174
  %608 = vmatpush1.bf16.msra.mxu0 %v173
  %609 = vmatprep.subr.bf16.mxu0 %v178
  %610 = vmatpush1.bf16.msra.mxu0 %v177
  %611 = vmatprep.subr.bf16.mxu0 %v182
  %612 = vmatpush1.bf16.msra.mxu0 %v181
  %613 = vmatprep.subr.bf16.mxu0 %v186
  %614 = vmatpush1.bf16.msra.mxu0 %v185
  %615 = vmatprep.subr.bf16.mxu0 0
  %616 = vmatpush1.bf16.msra.mxu0 0
  %617 = vmatprep.subr.bf16.mxu0 0
  %618 = vmatpush1.bf16.msra.mxu0 0
  %619 = vmatprep.subr.bf16.mxu0 0
  %620 = vmatpush1.bf16.msra.mxu0 0
  %621 = vmatprep.subr.bf16.mxu0 0
  %622 = vmatpush1.bf16.msra.mxu0 0
  %623 = vmatprep.subr.bf16.mxu0 0
  %624 = vmatpush1.bf16.msra.mxu0 0
  %625 = vmatprep.subr.bf16.mxu0 0
  %626 = vmatpush1.bf16.msra.mxu0 0
  %627 = vmatprep.subr.bf16.mxu0 0
  %628 = vmatpush1.bf16.msra.mxu0 0
  %629 = vmatprep.subr.bf16.mxu0 0
  %630 = vmatpush1.bf16.msra.mxu0 0
  %631 = vmatprep.mubr.bf16.mxu0 0
  %632 = vmatmul.mubr.bf16.gmra.mrb[0].mxu0 %v598
  %v633 = vpop.f32.mrb[0].mxu0
  %v634 = vadd.f32 0.0, %v633
  %v635 = vpop.f32.mrb[0].mxu0
  %v636 = vadd.f32 0.0, %v635
  %v637 = vpop.f32.mrb[0].mxu0
  %v638 = vpop.f32.mrb[0].mxu0
  %639 = vdwg.mxu0
  %640 = vmatprep.subr.bf16.mxu0 %v160
  %641 = vmatpush1.bf16.msra.mxu0 %v159
  %642 = vmatprep.subr.bf16.mxu0 %v164
  %643 = vmatpush1.bf16.msra.mxu0 %v163
  %644 = vmatprep.subr.bf16.mxu0 %v168
  %645 = vmatpush1.bf16.msra.mxu0 %v167
  %646 = vmatprep.subr.bf16.mxu0 %v172
  %647 = vmatpush1.bf16.msra.mxu0 %v171
  %648 = vmatprep.subr.bf16.mxu0 %v176
  %649 = vmatpush1.bf16.msra.mxu0 %v175
  %650 = vmatprep.subr.bf16.mxu0 %v180
  %651 = vmatpush1.bf16.msra.mxu0 %v179
  %652 = vmatprep.subr.bf16.mxu0 %v184
  %653 = vmatpush1.bf16.msra.mxu0 %v183
  %654 = vmatprep.subr.bf16.mxu0 %v188
  %655 = vmatpush1.bf16.msra.mxu0 %v187
  %656 = vmatprep.subr.bf16.mxu0 0
  %657 = vmatpush1.bf16.msra.mxu0 0
  %658 = vmatprep.subr.bf16.mxu0 0
  %659 = vmatpush1.bf16.msra.mxu0 0
  %660 = vmatprep.subr.bf16.mxu0 0
  %661 = vmatpush1.bf16.msra.mxu0 0
  %662 = vmatprep.subr.bf16.mxu0 0
  %663 = vmatpush1.bf16.msra.mxu0 0
  %664 = vmatprep.subr.bf16.mxu0 0
  %665 = vmatpush1.bf16.msra.mxu0 0
  %666 = vmatprep.subr.bf16.mxu0 0
  %667 = vmatpush1.bf16.msra.mxu0 0
  %668 = vmatprep.subr.bf16.mxu0 0
  %669 = vmatpush1.bf16.msra.mxu0 0
  %670 = vmatprep.subr.bf16.mxu0 0
  %671 = vmatpush1.bf16.msra.mxu0 0
  %672 = vmatprep.mubr.bf16.mxu0 0
  %673 = vmatmul.mubr.bf16.gmra.mrb[0].mxu0 %v598
  %v674 = vpop.f32.mrb[0].mxu0
  %v675 = vadd.f32 0.0, %v674
  %v676 = vpop.f32.mrb[0].mxu0
  %v677 = vadd.f32 0.0, %v676
  %v678 = vpop.f32.mrb[0].mxu0
  %v679 = vpop.f32.mrb[0].mxu0
  %680 = vdwg.mxu0
  %v681 = vadd.f32 %v594, %v634
  %v682 = vadd.f32 %v595, %v636
  %v683 = vadd.f32 %v596, %v675
  %v684 = vadd.f32 %v597, %v677
  %v685 = vxor.u32 %v681, 2147483648
  %v686 = vxor.u32 %v682, 2147483648
  %v687 = vxor.u32 %v683, 2147483648
  %v688 = vmul.f32 %v685, 1.442695
  %v689 = vpow.pop %v688
  %v690 = vmul.f32 %v686, 1.442695
  %v691 = vpow.pop %v690
  %v692 = vmul.f32 %v687, 1.442695
  %v693 = vpow.pop %v692
  %v694 = vadd.f32 %v689, 1.0
  %v695 = vadd.f32 %v691, 1.0
  %v696 = vadd.f32 %v693, 1.0
  %v697 = vrcp.pop %v694
  %v698 = vmul.f32 1.0, %v697
  %v699 = vrcp.pop %v695
  %v700 = vmul.f32 1.0, %v699
  %v701 = vrcp.pop %v696
  %v702 = vmul.f32 1.0, %v701
  %v703 = vtanh.pop %v684
  %v704 = vmul.f32 %v700, %v580
  %v705 = vmul.f32 %v698, %v703
  %v706 = vadd.f32 %v704, %v705
  %v707 = vtanh.pop %v706
  %v708 = vmul.f32 %v702, %v707
  %vm709 = vcmp.gt.s32.totalorder %v21, 3
  %v710 = vmax.f32 %v590, %v708
  %v711 = vsel %vm709, 1, 0
  %712 = vset.pattern.permute.xlu0 0
  %713 = vperm.xlu0 %712, %v711
  %v714 = vpop.permute.xlu0 %713
  %vm715 = vcmp.eq.s32.totalorder %v714, 1
  %v716 = vsel %vm715, %v710, %v590
  %s717 = smul.u32 4, 4
  %s718 = smul.addr %s717, 8
  %s719 = scalar_lea.vmem %s0, %s718
  %v720 = vld [vmem:[%s719] sm:$0xff]
  %v721 = vld [vmem:[%s719 + $0x8] sm:$0xff]
  %v722 = vld [vmem:[%s719 + $0x10] sm:$0xff]
  %v723 = vld [vmem:[%s719 + $0x18] sm:$0xff]
  %v724 = vpack.c.bf16 %v708, %v708
  %725 = vmatprep.subr.bf16.mxu0 %v158
  %726 = vmatpush1.bf16.msra.mxu0 %v157
  %727 = vmatprep.subr.bf16.mxu0 %v162
  %728 = vmatpush1.bf16.msra.mxu0 %v161
  %729 = vmatprep.subr.bf16.mxu0 %v166
  %730 = vmatpush1.bf16.msra.mxu0 %v165
  %731 = vmatprep.subr.bf16.mxu0 %v170
  %732 = vmatpush1.bf16.msra.mxu0 %v169
  %733 = vmatprep.subr.bf16.mxu0 %v174
  %734 = vmatpush1.bf16.msra.mxu0 %v173
  %735 = vmatprep.subr.bf16.mxu0 %v178
  %736 = vmatpush1.bf16.msra.mxu0 %v177
  %737 = vmatprep.subr.bf16.mxu0 %v182
  %738 = vmatpush1.bf16.msra.mxu0 %v181
  %739 = vmatprep.subr.bf16.mxu0 %v186
  %740 = vmatpush1.bf16.msra.mxu0 %v185
  %741 = vmatprep.subr.bf16.mxu0 0
  %742 = vmatpush1.bf16.msra.mxu0 0
  %743 = vmatprep.subr.bf16.mxu0 0
  %744 = vmatpush1.bf16.msra.mxu0 0
  %745 = vmatprep.subr.bf16.mxu0 0
  %746 = vmatpush1.bf16.msra.mxu0 0
  %747 = vmatprep.subr.bf16.mxu0 0
  %748 = vmatpush1.bf16.msra.mxu0 0
  %749 = vmatprep.subr.bf16.mxu0 0
  %750 = vmatpush1.bf16.msra.mxu0 0
  %751 = vmatprep.subr.bf16.mxu0 0
  %752 = vmatpush1.bf16.msra.mxu0 0
  %753 = vmatprep.subr.bf16.mxu0 0
  %754 = vmatpush1.bf16.msra.mxu0 0
  %755 = vmatprep.subr.bf16.mxu0 0
  %756 = vmatpush1.bf16.msra.mxu0 0
  %757 = vmatprep.mubr.bf16.mxu0 0
  %758 = vmatmul.mubr.bf16.gmra.mrb[0].mxu0 %v724
  %v759 = vpop.f32.mrb[0].mxu0
  %v760 = vadd.f32 0.0, %v759
  %v761 = vpop.f32.mrb[0].mxu0
  %v762 = vadd.f32 0.0, %v761
  %v763 = vpop.f32.mrb[0].mxu0
  %v764 = vpop.f32.mrb[0].mxu0
  %765 = vdwg.mxu0
  %766 = vmatprep.subr.bf16.mxu0 %v160
  %767 = vmatpush1.bf16.msra.mxu0 %v159
  %768 = vmatprep.subr.bf16.mxu0 %v164
  %769 = vmatpush1.bf16.msra.mxu0 %v163
  %770 = vmatprep.subr.bf16.mxu0 %v168
  %771 = vmatpush1.bf16.msra.mxu0 %v167
  %772 = vmatprep.subr.bf16.mxu0 %v172
  %773 = vmatpush1.bf16.msra.mxu0 %v171
  %774 = vmatprep.subr.bf16.mxu0 %v176
  %775 = vmatpush1.bf16.msra.mxu0 %v175
  %776 = vmatprep.subr.bf16.mxu0 %v180
  %777 = vmatpush1.bf16.msra.mxu0 %v179
  %778 = vmatprep.subr.bf16.mxu0 %v184
  %779 = vmatpush1.bf16.msra.mxu0 %v183
  %780 = vmatprep.subr.bf16.mxu0 %v188
  %781 = vmatpush1.bf16.msra.mxu0 %v187
  %782 = vmatprep.subr.bf16.mxu0 0
  %783 = vmatpush1.bf16.msra.mxu0 0
  %784 = vmatprep.subr.bf16.mxu0 0
  %785 = vmatpush1.bf16.msra.mxu0 0
  %786 = vmatprep.subr.bf16.mxu0 0
  %787 = vmatpush1.bf16.msra.mxu0 0
  %788 = vmatprep.subr.bf16.mxu0 0
  %789 = vmatpush1.bf16.msra.mxu0 0
  %790 = vmatprep.subr.bf16.mxu0 0
  %791 = vmatpush1.bf16.msra.mxu0 0
  %792 = vmatprep.subr.bf16.mxu0 0
  %793 = vmatpush1.bf16.msra.mxu0 0
  %794 = vmatprep.subr.bf16.mxu0 0
  %795 = vmatpush1.bf16.msra.mxu0 0
  %796 = vmatprep.subr.bf16.mxu0 0
  %797 = vmatpush1.bf16.msra.mxu0 0
  %798 = vmatprep.mubr.bf16.mxu0 0
  %799 = vmatmul.mubr.bf16.gmra.mrb[0].mxu0 %v724
  %v800 = vpop.f32.mrb[0].mxu0
  %v801 = vadd.f32 0.0, %v800
  %v802 = vpop.f32.mrb[0].mxu0
  %v803 = vadd.f32 0.0, %v802
  %v804 = vpop.f32.mrb[0].mxu0
  %v805 = vpop.f32.mrb[0].mxu0
  %806 = vdwg.mxu0
  %v807 = vadd.f32 %v720, %v760
  %v808 = vadd.f32 %v721, %v762
  %v809 = vadd.f32 %v722, %v801
  %v810 = vadd.f32 %v723, %v803
  %v811 = vxor.u32 %v807, 2147483648
  %v812 = vxor.u32 %v808, 2147483648
  %v813 = vxor.u32 %v809, 2147483648
  %v814 = vmul.f32 %v811, 1.442695
  %v815 = vpow.pop %v814
  %v816 = vmul.f32 %v812, 1.442695
  %v817 = vpow.pop %v816
  %v818 = vmul.f32 %v813, 1.442695
  %v819 = vpow.pop %v818
  %v820 = vadd.f32 %v815, 1.0
  %v821 = vadd.f32 %v817, 1.0
  %v822 = vadd.f32 %v819, 1.0
  %v823 = vrcp.pop %v820
  %v824 = vmul.f32 1.0, %v823
  %v825 = vrcp.pop %v821
  %v826 = vmul.f32 1.0, %v825
  %v827 = vrcp.pop %v822
  %v828 = vmul.f32 1.0, %v827
  %v829 = vtanh.pop %v810
  %v830 = vmul.f32 %v826, %v706
  %v831 = vmul.f32 %v824, %v829
  %v832 = vadd.f32 %v830, %v831
  %v833 = vtanh.pop %v832
  %v834 = vmul.f32 %v828, %v833
  %vm835 = vcmp.gt.s32.totalorder %v21, 4
  %v836 = vmax.f32 %v716, %v834
  %v837 = vsel %vm835, 1, 0
  %838 = vset.pattern.permute.xlu0 0
  %839 = vperm.xlu0 %838, %v837
  %v840 = vpop.permute.xlu0 %839
  %vm841 = vcmp.eq.s32.totalorder %v840, 1
  %v842 = vsel %vm841, %v836, %v716
  %s843 = smul.u32 5, 4
  %s844 = smul.addr %s843, 8
  %s845 = scalar_lea.vmem %s0, %s844
  %v846 = vld [vmem:[%s845] sm:$0xff]
  %v847 = vld [vmem:[%s845 + $0x8] sm:$0xff]
  %v848 = vld [vmem:[%s845 + $0x10] sm:$0xff]
  %v849 = vld [vmem:[%s845 + $0x18] sm:$0xff]
  %v850 = vpack.c.bf16 %v834, %v834
  %851 = vmatprep.subr.bf16.mxu0 %v158
  %852 = vmatpush1.bf16.msra.mxu0 %v157
  %853 = vmatprep.subr.bf16.mxu0 %v162
  %854 = vmatpush1.bf16.msra.mxu0 %v161
  %855 = vmatprep.subr.bf16.mxu0 %v166
  %856 = vmatpush1.bf16.msra.mxu0 %v165
  %857 = vmatprep.subr.bf16.mxu0 %v170
  %858 = vmatpush1.bf16.msra.mxu0 %v169
  %859 = vmatprep.subr.bf16.mxu0 %v174
  %860 = vmatpush1.bf16.msra.mxu0 %v173
  %861 = vmatprep.subr.bf16.mxu0 %v178
  %862 = vmatpush1.bf16.msra.mxu0 %v177
  %863 = vmatprep.subr.bf16.mxu0 %v182
  %864 = vmatpush1.bf16.msra.mxu0 %v181
  %865 = vmatprep.subr.bf16.mxu0 %v186
  %866 = vmatpush1.bf16.msra.mxu0 %v185
  %867 = vmatprep.subr.bf16.mxu0 0
  %868 = vmatpush1.bf16.msra.mxu0 0
  %869 = vmatprep.subr.bf16.mxu0 0
  %870 = vmatpush1.bf16.msra.mxu0 0
  %871 = vmatprep.subr.bf16.mxu0 0
  %872 = vmatpush1.bf16.msra.mxu0 0
  %873 = vmatprep.subr.bf16.mxu0 0
  %874 = vmatpush1.bf16.msra.mxu0 0
  %875 = vmatprep.subr.bf16.mxu0 0
  %876 = vmatpush1.bf16.msra.mxu0 0
  %877 = vmatprep.subr.bf16.mxu0 0
  %878 = vmatpush1.bf16.msra.mxu0 0
  %879 = vmatprep.subr.bf16.mxu0 0
  %880 = vmatpush1.bf16.msra.mxu0 0
  %881 = vmatprep.subr.bf16.mxu0 0
  %882 = vmatpush1.bf16.msra.mxu0 0
  %883 = vmatprep.mubr.bf16.mxu0 0
  %884 = vmatmul.mubr.bf16.gmra.mrb[0].mxu0 %v850
  %v885 = vpop.f32.mrb[0].mxu0
  %v886 = vadd.f32 0.0, %v885
  %v887 = vpop.f32.mrb[0].mxu0
  %v888 = vadd.f32 0.0, %v887
  %v889 = vpop.f32.mrb[0].mxu0
  %v890 = vpop.f32.mrb[0].mxu0
  %891 = vdwg.mxu0
  %892 = vmatprep.subr.bf16.mxu0 %v160
  %893 = vmatpush1.bf16.msra.mxu0 %v159
  %894 = vmatprep.subr.bf16.mxu0 %v164
  %895 = vmatpush1.bf16.msra.mxu0 %v163
  %896 = vmatprep.subr.bf16.mxu0 %v168
  %897 = vmatpush1.bf16.msra.mxu0 %v167
  %898 = vmatprep.subr.bf16.mxu0 %v172
  %899 = vmatpush1.bf16.msra.mxu0 %v171
  %900 = vmatprep.subr.bf16.mxu0 %v176
  %901 = vmatpush1.bf16.msra.mxu0 %v175
  %902 = vmatprep.subr.bf16.mxu0 %v180
  %903 = vmatpush1.bf16.msra.mxu0 %v179
  %904 = vmatprep.subr.bf16.mxu0 %v184
  %905 = vmatpush1.bf16.msra.mxu0 %v183
  %906 = vmatprep.subr.bf16.mxu0 %v188
  %907 = vmatpush1.bf16.msra.mxu0 %v187
  %908 = vmatprep.subr.bf16.mxu0 0
  %909 = vmatpush1.bf16.msra.mxu0 0
  %910 = vmatprep.subr.bf16.mxu0 0
  %911 = vmatpush1.bf16.msra.mxu0 0
  %912 = vmatprep.subr.bf16.mxu0 0
  %913 = vmatpush1.bf16.msra.mxu0 0
  %914 = vmatprep.subr.bf16.mxu0 0
  %915 = vmatpush1.bf16.msra.mxu0 0
  %916 = vmatprep.subr.bf16.mxu0 0
  %917 = vmatpush1.bf16.msra.mxu0 0
  %918 = vmatprep.subr.bf16.mxu0 0
  %919 = vmatpush1.bf16.msra.mxu0 0
  %920 = vmatprep.subr.bf16.mxu0 0
  %921 = vmatpush1.bf16.msra.mxu0 0
  %922 = vmatprep.subr.bf16.mxu0 0
  %923 = vmatpush1.bf16.msra.mxu0 0
  %924 = vmatprep.mubr.bf16.mxu0 0
  %925 = vmatmul.mubr.bf16.gmra.mrb[0].mxu0 %v850
  %v926 = vpop.f32.mrb[0].mxu0
  %v927 = vadd.f32 0.0, %v926
  %v928 = vpop.f32.mrb[0].mxu0
  %v929 = vadd.f32 0.0, %v928
  %v930 = vpop.f32.mrb[0].mxu0
  %v931 = vpop.f32.mrb[0].mxu0
  %932 = vdwg.mxu0
  %v933 = vadd.f32 %v846, %v886
  %v934 = vadd.f32 %v847, %v888
  %v935 = vadd.f32 %v848, %v927
  %v936 = vadd.f32 %v849, %v929
  %v937 = vxor.u32 %v933, 2147483648
  %v938 = vxor.u32 %v934, 2147483648
  %v939 = vxor.u32 %v935, 2147483648
  %v940 = vmul.f32 %v937, 1.442695
  %v941 = vpow.pop %v940
  %v942 = vmul.f32 %v938, 1.442695
  %v943 = vpow.pop %v942
  %v944 = vmul.f32 %v939, 1.442695
  %v945 = vpow.pop %v944
  %v946 = vadd.f32 %v941, 1.0
  %v947 = vadd.f32 %v943, 1.0
  %v948 = vadd.f32 %v945, 1.0
  %v949 = vrcp.pop %v946
  %v950 = vmul.f32 1.0, %v949
  %v951 = vrcp.pop %v947
  %v952 = vmul.f32 1.0, %v951
  %v953 = vrcp.pop %v948
  %v954 = vmul.f32 1.0, %v953
  %v955 = vtanh.pop %v936
  %v956 = vmul.f32 %v952, %v832
  %v957 = vmul.f32 %v950, %v955
  %v958 = vadd.f32 %v956, %v957
  %v959 = vtanh.pop %v958
  %v960 = vmul.f32 %v954, %v959
  %vm961 = vcmp.gt.s32.totalorder %v21, 5
  %v962 = vmax.f32 %v842, %v960
  %v963 = vsel %vm961, 1, 0
  %964 = vset.pattern.permute.xlu0 0
  %965 = vperm.xlu0 %964, %v963
  %v966 = vpop.permute.xlu0 %965
  %vm967 = vcmp.eq.s32.totalorder %v966, 1
  %v968 = vsel %vm967, %v962, %v842
  %s969 = smul.u32 6, 4
  %s970 = smul.addr %s969, 8
  %s971 = scalar_lea.vmem %s0, %s970
  %v972 = vld [vmem:[%s971] sm:$0xff]
  %v973 = vld [vmem:[%s971 + $0x8] sm:$0xff]
  %v974 = vld [vmem:[%s971 + $0x10] sm:$0xff]
  %v975 = vld [vmem:[%s971 + $0x18] sm:$0xff]
  %v976 = vpack.c.bf16 %v960, %v960
  %977 = vmatprep.subr.bf16.mxu0 %v158
  %978 = vmatpush1.bf16.msra.mxu0 %v157
  %979 = vmatprep.subr.bf16.mxu0 %v162
  %980 = vmatpush1.bf16.msra.mxu0 %v161
  %981 = vmatprep.subr.bf16.mxu0 %v166
  %982 = vmatpush1.bf16.msra.mxu0 %v165
  %983 = vmatprep.subr.bf16.mxu0 %v170
  %984 = vmatpush1.bf16.msra.mxu0 %v169
  %985 = vmatprep.subr.bf16.mxu0 %v174
  %986 = vmatpush1.bf16.msra.mxu0 %v173
  %987 = vmatprep.subr.bf16.mxu0 %v178
  %988 = vmatpush1.bf16.msra.mxu0 %v177
  %989 = vmatprep.subr.bf16.mxu0 %v182
  %990 = vmatpush1.bf16.msra.mxu0 %v181
  %991 = vmatprep.subr.bf16.mxu0 %v186
  %992 = vmatpush1.bf16.msra.mxu0 %v185
  %993 = vmatprep.subr.bf16.mxu0 0
  %994 = vmatpush1.bf16.msra.mxu0 0
  %995 = vmatprep.subr.bf16.mxu0 0
  %996 = vmatpush1.bf16.msra.mxu0 0
  %997 = vmatprep.subr.bf16.mxu0 0
  %998 = vmatpush1.bf16.msra.mxu0 0
  %999 = vmatprep.subr.bf16.mxu0 0
  %1000 = vmatpush1.bf16.msra.mxu0 0
  %1001 = vmatprep.subr.bf16.mxu0 0
  %1002 = vmatpush1.bf16.msra.mxu0 0
  %1003 = vmatprep.subr.bf16.mxu0 0
  %1004 = vmatpush1.bf16.msra.mxu0 0
  %1005 = vmatprep.subr.bf16.mxu0 0
  %1006 = vmatpush1.bf16.msra.mxu0 0
  %1007 = vmatprep.subr.bf16.mxu0 0
  %1008 = vmatpush1.bf16.msra.mxu0 0
  %1009 = vmatprep.mubr.bf16.mxu0 0
  %1010 = vmatmul.mubr.bf16.gmra.mrb[0].mxu0 %v976
  %v1011 = vpop.f32.mrb[0].mxu0
  %v1012 = vadd.f32 0.0, %v1011
  %v1013 = vpop.f32.mrb[0].mxu0
  %v1014 = vadd.f32 0.0, %v1013
  %v1015 = vpop.f32.mrb[0].mxu0
  %v1016 = vpop.f32.mrb[0].mxu0
  %1017 = vdwg.mxu0
  %1018 = vmatprep.subr.bf16.mxu0 %v160
  %1019 = vmatpush1.bf16.msra.mxu0 %v159
  %1020 = vmatprep.subr.bf16.mxu0 %v164
  %1021 = vmatpush1.bf16.msra.mxu0 %v163
  %1022 = vmatprep.subr.bf16.mxu0 %v168
  %1023 = vmatpush1.bf16.msra.mxu0 %v167
  %1024 = vmatprep.subr.bf16.mxu0 %v172
  %1025 = vmatpush1.bf16.msra.mxu0 %v171
  %1026 = vmatprep.subr.bf16.mxu0 %v176
  %1027 = vmatpush1.bf16.msra.mxu0 %v175
  %1028 = vmatprep.subr.bf16.mxu0 %v180
  %1029 = vmatpush1.bf16.msra.mxu0 %v179
  %1030 = vmatprep.subr.bf16.mxu0 %v184
  %1031 = vmatpush1.bf16.msra.mxu0 %v183
  %1032 = vmatprep.subr.bf16.mxu0 %v188
  %1033 = vmatpush1.bf16.msra.mxu0 %v187
  %1034 = vmatprep.subr.bf16.mxu0 0
  %1035 = vmatpush1.bf16.msra.mxu0 0
  %1036 = vmatprep.subr.bf16.mxu0 0
  %1037 = vmatpush1.bf16.msra.mxu0 0
  %1038 = vmatprep.subr.bf16.mxu0 0
  %1039 = vmatpush1.bf16.msra.mxu0 0
  %1040 = vmatprep.subr.bf16.mxu0 0
  %1041 = vmatpush1.bf16.msra.mxu0 0
  %1042 = vmatprep.subr.bf16.mxu0 0
  %1043 = vmatpush1.bf16.msra.mxu0 0
  %1044 = vmatprep.subr.bf16.mxu0 0
  %1045 = vmatpush1.bf16.msra.mxu0 0
  %1046 = vmatprep.subr.bf16.mxu0 0
  %1047 = vmatpush1.bf16.msra.mxu0 0
  %1048 = vmatprep.subr.bf16.mxu0 0
  %1049 = vmatpush1.bf16.msra.mxu0 0
  %1050 = vmatprep.mubr.bf16.mxu0 0
  %1051 = vmatmul.mubr.bf16.gmra.mrb[0].mxu0 %v976
  %v1052 = vpop.f32.mrb[0].mxu0
  %v1053 = vadd.f32 0.0, %v1052
  %v1054 = vpop.f32.mrb[0].mxu0
  %v1055 = vadd.f32 0.0, %v1054
  %v1056 = vpop.f32.mrb[0].mxu0
  %v1057 = vpop.f32.mrb[0].mxu0
  %1058 = vdwg.mxu0
  %v1059 = vadd.f32 %v972, %v1012
  %v1060 = vadd.f32 %v973, %v1014
  %v1061 = vadd.f32 %v974, %v1053
  %v1062 = vadd.f32 %v975, %v1055
  %v1063 = vxor.u32 %v1059, 2147483648
  %v1064 = vxor.u32 %v1060, 2147483648
  %v1065 = vxor.u32 %v1061, 2147483648
  %v1066 = vmul.f32 %v1063, 1.442695
  %v1067 = vpow.pop %v1066
  %v1068 = vmul.f32 %v1064, 1.442695
  %v1069 = vpow.pop %v1068
  %v1070 = vmul.f32 %v1065, 1.442695
  %v1071 = vpow.pop %v1070
  %v1072 = vadd.f32 %v1067, 1.0
  %v1073 = vadd.f32 %v1069, 1.0
  %v1074 = vadd.f32 %v1071, 1.0
  %v1075 = vrcp.pop %v1072
  %v1076 = vmul.f32 1.0, %v1075
  %v1077 = vrcp.pop %v1073
  %v1078 = vmul.f32 1.0, %v1077
  %v1079 = vrcp.pop %v1074
  %v1080 = vmul.f32 1.0, %v1079
  %v1081 = vtanh.pop %v1062
  %v1082 = vmul.f32 %v1078, %v958
  %v1083 = vmul.f32 %v1076, %v1081
  %v1084 = vadd.f32 %v1082, %v1083
  %v1085 = vtanh.pop %v1084
  %v1086 = vmul.f32 %v1080, %v1085
  %vm1087 = vcmp.gt.s32.totalorder %v21, 6
  %v1088 = vmax.f32 %v968, %v1086
  %v1089 = vsel %vm1087, 1, 0
  %1090 = vset.pattern.permute.xlu0 0
  %1091 = vperm.xlu0 %1090, %v1089
  %v1092 = vpop.permute.xlu0 %1091
  %vm1093 = vcmp.eq.s32.totalorder %v1092, 1
  %v1094 = vsel %vm1093, %v1088, %v968
  %s1095 = smul.u32 7, 4
  %s1096 = smul.addr %s1095, 8
  %s1097 = scalar_lea.vmem %s0, %s1096
  %v1098 = vld [vmem:[%s1097] sm:$0xff]
  %v1099 = vld [vmem:[%s1097 + $0x8] sm:$0xff]
  %v1100 = vld [vmem:[%s1097 + $0x10] sm:$0xff]
  %v1101 = vld [vmem:[%s1097 + $0x18] sm:$0xff]
  %v1102 = vpack.c.bf16 %v1086, %v1086
  %1103 = vmatprep.subr.bf16.mxu0 %v158
  %1104 = vmatpush1.bf16.msra.mxu0 %v157
  %1105 = vmatprep.subr.bf16.mxu0 %v162
  %1106 = vmatpush1.bf16.msra.mxu0 %v161
  %1107 = vmatprep.subr.bf16.mxu0 %v166
  %1108 = vmatpush1.bf16.msra.mxu0 %v165
  %1109 = vmatprep.subr.bf16.mxu0 %v170
  %1110 = vmatpush1.bf16.msra.mxu0 %v169
  %1111 = vmatprep.subr.bf16.mxu0 %v174
  %1112 = vmatpush1.bf16.msra.mxu0 %v173
  %1113 = vmatprep.subr.bf16.mxu0 %v178
  %1114 = vmatpush1.bf16.msra.mxu0 %v177
  %1115 = vmatprep.subr.bf16.mxu0 %v182
  %1116 = vmatpush1.bf16.msra.mxu0 %v181
  %1117 = vmatprep.subr.bf16.mxu0 %v186
  %1118 = vmatpush1.bf16.msra.mxu0 %v185
  %1119 = vmatprep.subr.bf16.mxu0 0
  %1120 = vmatpush1.bf16.msra.mxu0 0
  %1121 = vmatprep.subr.bf16.mxu0 0
  %1122 = vmatpush1.bf16.msra.mxu0 0
  %1123 = vmatprep.subr.bf16.mxu0 0
  %1124 = vmatpush1.bf16.msra.mxu0 0
  %1125 = vmatprep.subr.bf16.mxu0 0
  %1126 = vmatpush1.bf16.msra.mxu0 0
  %1127 = vmatprep.subr.bf16.mxu0 0
  %1128 = vmatpush1.bf16.msra.mxu0 0
  %1129 = vmatprep.subr.bf16.mxu0 0
  %1130 = vmatpush1.bf16.msra.mxu0 0
  %1131 = vmatprep.subr.bf16.mxu0 0
  %1132 = vmatpush1.bf16.msra.mxu0 0
  %1133 = vmatprep.subr.bf16.mxu0 0
  %1134 = vmatpush1.bf16.msra.mxu0 0
  %1135 = vmatprep.mubr.bf16.mxu0 0
  %1136 = vmatmul.mubr.bf16.gmra.mrb[0].mxu0 %v1102
  %v1137 = vpop.f32.mrb[0].mxu0
  %v1138 = vadd.f32 0.0, %v1137
  %v1139 = vpop.f32.mrb[0].mxu0
  %v1140 = vadd.f32 0.0, %v1139
  %v1141 = vpop.f32.mrb[0].mxu0
  %v1142 = vpop.f32.mrb[0].mxu0
  %1143 = vdwg.mxu0
  %1144 = vmatprep.subr.bf16.mxu0 %v160
  %1145 = vmatpush1.bf16.msra.mxu0 %v159
  %1146 = vmatprep.subr.bf16.mxu0 %v164
  %1147 = vmatpush1.bf16.msra.mxu0 %v163
  %1148 = vmatprep.subr.bf16.mxu0 %v168
  %1149 = vmatpush1.bf16.msra.mxu0 %v167
  %1150 = vmatprep.subr.bf16.mxu0 %v172
  %1151 = vmatpush1.bf16.msra.mxu0 %v171
  %1152 = vmatprep.subr.bf16.mxu0 %v176
  %1153 = vmatpush1.bf16.msra.mxu0 %v175
  %1154 = vmatprep.subr.bf16.mxu0 %v180
  %1155 = vmatpush1.bf16.msra.mxu0 %v179
  %1156 = vmatprep.subr.bf16.mxu0 %v184
  %1157 = vmatpush1.bf16.msra.mxu0 %v183
  %1158 = vmatprep.subr.bf16.mxu0 %v188
  %1159 = vmatpush1.bf16.msra.mxu0 %v187
  %1160 = vmatprep.subr.bf16.mxu0 0
  %1161 = vmatpush1.bf16.msra.mxu0 0
  %1162 = vmatprep.subr.bf16.mxu0 0
  %1163 = vmatpush1.bf16.msra.mxu0 0
  %1164 = vmatprep.subr.bf16.mxu0 0
  %1165 = vmatpush1.bf16.msra.mxu0 0
  %1166 = vmatprep.subr.bf16.mxu0 0
  %1167 = vmatpush1.bf16.msra.mxu0 0
  %1168 = vmatprep.subr.bf16.mxu0 0
  %1169 = vmatpush1.bf16.msra.mxu0 0
  %1170 = vmatprep.subr.bf16.mxu0 0
  %1171 = vmatpush1.bf16.msra.mxu0 0
  %1172 = vmatprep.subr.bf16.mxu0 0
  %1173 = vmatpush1.bf16.msra.mxu0 0
  %1174 = vmatprep.subr.bf16.mxu0 0
  %1175 = vmatpush1.bf16.msra.mxu0 0
  %1176 = vmatprep.mubr.bf16.mxu0 0
  %1177 = vmatmul.mubr.bf16.gmra.mrb[0].mxu0 %v1102
  %v1178 = vpop.f32.mrb[0].mxu0
  %v1179 = vadd.f32 0.0, %v1178
  %v1180 = vpop.f32.mrb[0].mxu0
  %v1181 = vadd.f32 0.0, %v1180
  %v1182 = vpop.f32.mrb[0].mxu0
  %v1183 = vpop.f32.mrb[0].mxu0
  %1184 = vdwg.mxu0
  %v1185 = vadd.f32 %v1098, %v1138
  %v1186 = vadd.f32 %v1099, %v1140
  %v1187 = vadd.f32 %v1100, %v1179
  %v1188 = vadd.f32 %v1101, %v1181
  %v1189 = vxor.u32 %v1185, 2147483648
  %v1190 = vxor.u32 %v1186, 2147483648
  %v1191 = vxor.u32 %v1187, 2147483648
  %v1192 = vmul.f32 %v1189, 1.442695
  %v1193 = vpow.pop %v1192
  %v1194 = vmul.f32 %v1190, 1.442695
  %v1195 = vpow.pop %v1194
  %v1196 = vmul.f32 %v1191, 1.442695
  %v1197 = vpow.pop %v1196
  %v1198 = vadd.f32 %v1193, 1.0
  %v1199 = vadd.f32 %v1195, 1.0
  %v1200 = vadd.f32 %v1197, 1.0
  %v1201 = vrcp.pop %v1198
  %v1202 = vmul.f32 1.0, %v1201
  %v1203 = vrcp.pop %v1199
  %v1204 = vmul.f32 1.0, %v1203
  %v1205 = vrcp.pop %v1200
  %v1206 = vmul.f32 1.0, %v1205
  %v1207 = vtanh.pop %v1188
  %v1208 = vmul.f32 %v1204, %v1084
  %v1209 = vmul.f32 %v1202, %v1207
  %v1210 = vadd.f32 %v1208, %v1209
  %v1211 = vtanh.pop %v1210
  %v1212 = vmul.f32 %v1206, %v1211
  %vm1213 = vcmp.gt.s32.totalorder %v21, 7
  %v1214 = vmax.f32 %v1094, %v1212
  %v1215 = vsel %vm1213, 1, 0
  %1216 = vset.pattern.permute.xlu0 0
  %1217 = vperm.xlu0 %1216, %v1215
  %v1218 = vpop.permute.xlu0 %1217
  %vm1219 = vcmp.eq.s32.totalorder %v1218, 1
  %v1220 = vsel %vm1219, %v1214, %v1094
  %v1221 = vsel %vm337, %v1220, 0.0
  %v1222 = vpack.c.bf16 %v1221, %v1221
  %v1223 = vld [vmem:[%s3] sm:$0xf]
  %v1224 = vld [vmem:[%s3 + $0x4] sm:$0xf]
  %v1225 = vld [vmem:[%s3 + $0x8] sm:$0xf]
  %v1226 = vld [vmem:[%s3 + $0xc] sm:$0xf]
  %v1227 = vld [vmem:[%s3 + $0x10] sm:$0xf]
  %v1228 = vld [vmem:[%s3 + $0x14] sm:$0xf]
  %v1229 = vld [vmem:[%s3 + $0x18] sm:$0xf]
  %v1230 = vld [vmem:[%s3 + $0x1c] sm:$0xf]
  %v1231 = vld [vmem:[%s3 + $0x20] sm:$0xf]
  %v1232 = vld [vmem:[%s3 + $0x24] sm:$0xf]
  %v1233 = vld [vmem:[%s3 + $0x28] sm:$0xf]
  %v1234 = vld [vmem:[%s3 + $0x2c] sm:$0xf]
  %v1235 = vld [vmem:[%s3 + $0x30] sm:$0xf]
  %v1236 = vld [vmem:[%s3 + $0x34] sm:$0xf]
  %v1237 = vld [vmem:[%s3 + $0x38] sm:$0xf]
  %v1238 = vld [vmem:[%s3 + $0x3c] sm:$0xf]
  %v1239 = vld [vmem:[%s4] sm:$0x1]
  %v1241 = vlaneseq
  %v1242 = vshrl.u32 %v1241, 7
  %v1243 = vsub.s32 0, %v1242
  %v1244 = vrot.slane %v1239, %v1243
  %v1262 = vunpack.c.l.b16 %v1223
  %v1263 = vunpack.c.l.b16 %v1224
  %v1264 = vunpack.c.l.b16 %v1225
  %v1265 = vunpack.c.l.b16 %v1226
  %v1266 = vunpack.c.l.b16 %v1227
  %v1267 = vunpack.c.l.b16 %v1228
  %v1268 = vunpack.c.l.b16 %v1229
  %v1269 = vunpack.c.l.b16 %v1230
  %v1270 = vunpack.c.l.b16 %v1231
  %v1271 = vunpack.c.l.b16 %v1232
  %v1272 = vunpack.c.l.b16 %v1233
  %v1273 = vunpack.c.l.b16 %v1234
  %v1274 = vunpack.c.l.b16 %v1235
  %v1275 = vunpack.c.l.b16 %v1236
  %v1276 = vunpack.c.l.b16 %v1237
  %v1277 = vunpack.c.l.b16 %v1238
  %v1278 = vpack.c.b16 %v1263, %v1262
  %v1279 = vpack.c.b16 %v1265, %v1264
  %v1280 = vpack.c.b16 %v1267, %v1266
  %v1281 = vpack.c.b16 %v1269, %v1268
  %v1282 = vpack.c.b16 %v1271, %v1270
  %v1283 = vpack.c.b16 %v1273, %v1272
  %v1284 = vpack.c.b16 %v1275, %v1274
  %v1285 = vpack.c.b16 %v1277, %v1276
  %1294 = vmatprep.subr.bf16.mxu0 0
  %1295 = vmatpush1.bf16.msra.mxu0 %v1278
  %1296 = vmatprep.subr.bf16.mxu0 0
  %1297 = vmatpush1.bf16.msra.mxu0 %v1279
  %1298 = vmatprep.subr.bf16.mxu0 0
  %1299 = vmatpush1.bf16.msra.mxu0 %v1280
  %1300 = vmatprep.subr.bf16.mxu0 0
  %1301 = vmatpush1.bf16.msra.mxu0 %v1281
  %1302 = vmatprep.subr.bf16.mxu0 0
  %1303 = vmatpush1.bf16.msra.mxu0 %v1282
  %1304 = vmatprep.subr.bf16.mxu0 0
  %1305 = vmatpush1.bf16.msra.mxu0 %v1283
  %1306 = vmatprep.subr.bf16.mxu0 0
  %1307 = vmatpush1.bf16.msra.mxu0 %v1284
  %1308 = vmatprep.subr.bf16.mxu0 0
  %1309 = vmatpush1.bf16.msra.mxu0 %v1285
  %1310 = vmatprep.subr.bf16.mxu0 0
  %1311 = vmatpush1.bf16.msra.mxu0 0
  %1312 = vmatprep.subr.bf16.mxu0 0
  %1313 = vmatpush1.bf16.msra.mxu0 0
  %1314 = vmatprep.subr.bf16.mxu0 0
  %1315 = vmatpush1.bf16.msra.mxu0 0
  %1316 = vmatprep.subr.bf16.mxu0 0
  %1317 = vmatpush1.bf16.msra.mxu0 0
  %1318 = vmatprep.subr.bf16.mxu0 0
  %1319 = vmatpush1.bf16.msra.mxu0 0
  %1320 = vmatprep.subr.bf16.mxu0 0
  %1321 = vmatpush1.bf16.msra.mxu0 0
  %1322 = vmatprep.subr.bf16.mxu0 0
  %1323 = vmatpush1.bf16.msra.mxu0 0
  %1324 = vmatprep.subr.bf16.mxu0 0
  %1325 = vmatpush1.bf16.msra.mxu0 0
  %1326 = vmatprep.mubr.bf16.mxu0 0
  %1327 = vmatmul.mubr.bf16.gmra.mrb[0].mxu0 %v1222
  %v1328 = vpop.f32.mrb[0].mxu0
  %v1329 = vadd.f32 %v1244, %v1328
  %v1330 = vpop.f32.mrb[0].mxu0
  %v1331 = vpop.f32.mrb[0].mxu0
  %v1332 = vpop.f32.mrb[0].mxu0
  %1333 = vdwg.mxu0
  %1334 = vst [vmem:[%s5] sm:$0xff] %v1329
  // Predicated region
  $region22: #{char_rnn_classifier_pallas.1} parent=0 // pred_check
    _
  $region23: #{char_rnn_classifier_pallas.1} parent=0 // pred_check_branch
    %1336 = sbr.rel (0) target = $region25
  $region24: #{char_rnn_classifier_pallas.1} parent=0 // pred_region
    _
  $region25: #{char_rnn_classifier_pallas.1} parent=0 // pred_fallthru
    _
  // Predicated region
  $region26: #{char_rnn_classifier_pallas.1} parent=0 // pred_check
    _
  $region27: #{char_rnn_classifier_pallas.1} parent=0 // pred_check_branch
    %1338 = sbr.rel (0) target = $region29
  $region28: #{char_rnn_classifier_pallas.1} parent=0 // pred_region
    _
  $region29: #{char_rnn_classifier_pallas.1} parent=0 // pred_fallthru
    _

</llo_original>
